<compile_context>
chip_gen: v6e
topology: v6e:2x2x1
jax: 0.10.0
libtpu: 0.0.40
codegen_flags: <defaults>
</compile_context>

<pallas_src>
import functools

import jax
import jax.numpy as jnp
from jax.experimental import pallas as pl
from jax.experimental.pallas import tpu as pltpu

# Model configuration (matches FCN5(inter_chan_list=[32, 32], in_chan=8, out_chan=2))
IN_CHAN = 8
INTER_CHAN_LIST = [32, 32]
OUT_CHAN = 2
H1, H2 = INTER_CHAN_LIST

LANE = 128          # lane-padded hidden width for the internal math; zero-padded lanes
                    # stay exactly zero through bias-add and PReLU, so padding is inert


def fcn5_kernel(a_ref, x_ref, w1_ref, w2_ref, w3_ref, b_ref, o_ref):
    """Fused 3-layer MLP with PReLU activations.

    a_ref : (2,) f32 SMEM (scalar prefetch)  — PReLU alphas
    x_ref : (TM, IN_CHAN) f32                — per-step batch tile (only operand DMA'd
                                               each step; cast to bf16 in-kernel).
                                               NOTE: the dot below contracts exactly
                                               K=IN_CHAN=8 (the full block); do not
                                               widen the contraction past the block.
    w*_ref: bf16, lane-padded to 128, VMEM-resident (constant index_map)
    b_ref : (3, LANE) f32, resident          — packed, lane-padded biases
    o_ref : (TM, OUT_CHAN) f32               — narrow output (masked stores)
    """
    x = x_ref[...].astype(jnp.bfloat16)          # VPU cast, hidden under MXU work

    # Layer 1: Linear (+ Dropout = identity) + PReLU — f32 accumulate on MXU
    h = jnp.dot(x, w1_ref[...], preferred_element_type=jnp.float32) + b_ref[0:1, :]
    h = jnp.where(h >= 0.0, h, a_ref[0] * h)

    # Layer 2: Linear (+ Dropout = identity) + PReLU
    h = jnp.dot(h.astype(w2_ref.dtype), w2_ref[...],
                preferred_element_type=jnp.float32) + b_ref[1:2, :]
    h = jnp.where(h >= 0.0, h, a_ref[1] * h)

    # Output layer: Linear (+ Dropout = identity). Padded lanes are exactly 0; only
    # the real OUT_CHAN columns are stored (narrow HBM writeback).
    out = jnp.dot(h.astype(w3_ref.dtype), w3_ref[...],
                  preferred_element_type=jnp.float32) + b_ref[2:3, :]
    o_ref[...] = out[:, :OUT_CHAN].astype(o_ref.dtype)


def init_params(key):
    """Deterministic init mimicking PyTorch defaults:
       Linear: W, b ~ U(-1/sqrt(fan_in), 1/sqrt(fan_in)); PReLU: alpha = 0.25."""
    dims = [IN_CHAN] + INTER_CHAN_LIST + [OUT_CHAN]
    params = []
    for i in range(len(dims) - 1):
        fan_in, fan_out = dims[i], dims[i + 1]
        key, kw, kb = jax.random.split(key, 3)
        bound = 1.0 / (fan_in ** 0.5)
        # stored directly as (in, out) for x @ W
        w = jax.random.uniform(kw, (fan_in, fan_out), jnp.float32, -bound, bound)
        b = jax.random.uniform(kb, (1, fan_out), jnp.float32, -bound, bound)
        params.append((w, b))
    alphas = [jnp.full((1, 1), 0.25, jnp.float32) for _ in range(len(INTER_CHAN_LIST))]
    return params, alphas


def pack_params(params, alphas):
    """One-time layout: lane-pad weights/biases to 128 and cast weights to bf16.
    Done once in the wrapper so the per-step kernel path is pure vmatmul pushes."""
    (w1, b1), (w2, b2), (w3, b3) = params
    # Weight lane padding. Zero rows/cols contribute nothing to the contractions.
    w1p = jnp.zeros((IN_CHAN, LANE), jnp.float32).at[:, :H1].set(w1)
    w2p = jnp.zeros((LANE, LANE), jnp.float32).at[:H1, :H2].set(w2)
    w3p = jnp.zeros((LANE, LANE), jnp.float32).at[:H2, :OUT_CHAN].set(w3)
    w1p, w2p, w3p = (w.astype(jnp.bfloat16) for w in (w1p, w2p, w3p))

    b_packed = jnp.zeros((3, LANE), jnp.float32)
    b_packed = b_packed.at[0, :H1].set(b1[0])
    b_packed = b_packed.at[1, :H2].set(b2[0])
    b_packed = b_packed.at[2, :OUT_CHAN].set(b3[0])

    a_packed = jnp.concatenate([a.reshape(1) for a in alphas]).astype(jnp.float32)
    return (w1p, w2p, w3p), b_packed, a_packed


def _round_up(v, m):
    return ((v + m - 1) // m) * m


@functools.partial(jax.jit, static_argnames=("tm",))
def fcn5_forward(x, w_packed, b_packed, a_packed, tm=2048):
    w1p, w2p, w3p = w_packed
    batch = x.shape[0]

    # --- Static tile choice (shapes are static under jit) ------------------------
    # Per-grid-step overhead (~0.35 us) dominates this tiny MLP, so use as few steps
    # as possible.  For mid-size batches use exactly 2 even steps so v7x's two TCs
    # each take half of the "parallel" batch axis; tiny batches use a single step.
    tm = max(8, (tm // 8) * 8)
    b_pad = _round_up(batch, 8)                      # sublane-align rows
    if b_pad > tm:
        tm_eff = tm                                  # large batch: tm-row steps
    elif b_pad >= 256:
        tm_eff = _round_up(b_pad // 2, 8)            # exactly 2 even steps (megacore)
    else:
        tm_eff = b_pad                               # tiny batch: single step
    grid_m = pl.cdiv(b_pad, tm_eff)
    b_pad = grid_m * tm_eff

    # Pad rows only when the tile doesn't divide the batch (no-op for the test shape);
    # padded rows are zeros -> their outputs are the bias chain and get sliced off.
    xt = x if b_pad == batch else jnp.pad(x, ((0, b_pad - batch), (0, 0)))

    grid_spec = pltpu.PrefetchScalarGridSpec(
        num_scalar_prefetch=1,                       # alphas -> SMEM scalars
        grid=(grid_m,),
        in_specs=[
            # x tile: only operand DMA'd every grid step (f32, cast in-kernel)
            pl.BlockSpec((tm_eff, IN_CHAN), lambda i, a: (i, 0)),
            # weights / biases: constant index_map -> fetched once, stay resident
            pl.BlockSpec((IN_CHAN, LANE), lambda i, a: (0, 0)),
            pl.BlockSpec((LANE, LANE), lambda i, a: (0, 0)),
            pl.BlockSpec((LANE, LANE), lambda i, a: (0, 0)),
            pl.BlockSpec((3, LANE), lambda i, a: (0, 0)),
        ],
        # narrow output: only the real OUT_CHAN columns ever touch HBM
        out_specs=pl.BlockSpec((tm_eff, OUT_CHAN), lambda i, a: (i, 0)),
    )

    out_padded = pl.pallas_call(
        fcn5_kernel,
        out_shape=jax.ShapeDtypeStruct((b_pad, OUT_CHAN), jnp.float32),
        grid_spec=grid_spec,
        compiler_params=pltpu.CompilerParams(
            dimension_semantics=("parallel",)),      # shard batch axis across TCs (v7x)
    )(a_packed, xt, w1p, w2p, w3p, b_packed)

    return out_padded if b_pad == batch else out_padded[:batch]


def fcn5_reference(x, params, alphas):
    """Pure-JAX reference. Mirrors the kernel's bf16 rounding of x / weights at the
    matmul boundary (accumulation stays f32 in both), so the check is tight."""
    def r(v):  # bf16 round-trip
        return v.astype(jnp.bfloat16).astype(jnp.float32)

    (w1, b1), (w2, b2), (w3, b3) = params
    a1, a2 = alphas
    h = r(x) @ r(w1) + b1
    h = jnp.where(h >= 0, h, a1.reshape(()) * h)
    h = r(h) @ r(w2) + b2
    h = jnp.where(h >= 0, h, a2.reshape(()) * h)
    return r(h) @ r(w3) + b3


if __name__ == "__main__":
    BATCH = 1024   # -> 2 even grid steps of 512 rows (both v7x TCs busy), no padding

    key = jax.random.PRNGKey(0)
    key, kx = jax.random.split(key)
    x = jax.random.normal(kx, (BATCH, IN_CHAN), jnp.float32)

    params, alphas = init_params(key)
    w_packed, b_packed, a_packed = pack_params(params, alphas)

    out = fcn5_forward(x, w_packed, b_packed, a_packed)
    out = jax.block_until_ready(out)

    ref = fcn5_reference(x, params, alphas)
    assert out.shape == (BATCH, OUT_CHAN)
    assert jnp.allclose(out, ref, atol=1e-4, rtol=1e-4), float(jnp.max(jnp.abs(out - ref)))

    print("KERNEL_OK")
</pallas_src>

<mosaic_0001>
module attributes {stable_mosaic.version = 11 : i64} {
  func.func @fcn5_kernel(%arg0: i32, %arg1: memref<2xf32, #tpu.memory_space<smem>>, %arg2: memref<512x8xf32, #tpu.memory_space<vmem>>, %arg3: memref<8x128xbf16, #tpu.memory_space<vmem>>, %arg4: memref<128x128xbf16, #tpu.memory_space<vmem>>, %arg5: memref<128x128xbf16, #tpu.memory_space<vmem>>, %arg6: memref<3x128xf32, #tpu.memory_space<vmem>>, %arg7: memref<512x2xf32, #tpu.memory_space<vmem>>) attributes {dimension_semantics = [#tpu.dimension_semantics<parallel>], iteration_bounds = array<i64: 2>, scalar_prefetch = 1 : i64, scratch_operands = 0 : i64, tpu.core_type = #tpu.core_type<tc>, window_params = [{transform_indices = @transform_0, window_bounds = array<i64: 512, 8>}, {pipeline_mode = #tpu.pipeline_mode<synchronous>, transform_indices = @transform_1, window_bounds = array<i64: 8, 128>}, {pipeline_mode = #tpu.pipeline_mode<synchronous>, transform_indices = @transform_2, window_bounds = array<i64: 128, 128>}, {pipeline_mode = #tpu.pipeline_mode<synchronous>, transform_indices = @transform_3, window_bounds = array<i64: 128, 128>}, {pipeline_mode = #tpu.pipeline_mode<synchronous>, transform_indices = @transform_4, window_bounds = array<i64: 3, 128>}, {transform_indices = @transform_5, window_bounds = array<i64: 512, 2>}]} {
    %c0 = arith.constant 0 : index
    %c0_0 = arith.constant 0 : index
    %0 = vector.load %arg2[%c0, %c0_0] : memref<512x8xf32, #tpu.memory_space<vmem>>, vector<512x8xf32>
    %1 = arith.truncf %0 : vector<512x8xf32> to vector<512x8xbf16>
    %c0_1 = arith.constant 0 : index
    %c0_2 = arith.constant 0 : index
    %2 = vector.load %arg3[%c0_1, %c0_2] : memref<8x128xbf16, #tpu.memory_space<vmem>>, vector<8x128xbf16>
    %cst = arith.constant dense<0.000000e+00> : vector<512x128xf32>
    %3 = tpu.matmul %1, %2, %cst {dimension_numbers = #tpu.dot_dimension_numbers<[1], [0], [0], [1], [0, 0, 1, 1], [], []>} : vector<512x8xbf16>, vector<8x128xbf16>, vector<512x128xf32> -> vector<512x128xf32>
    %c0_3 = arith.constant 0 : index
    %c0_4 = arith.constant 0 : index
    %4 = vector.load %arg6[%c0_3, %c0_4] : memref<3x128xf32, #tpu.memory_space<vmem>>, vector<1x128xf32>
    %5 = vector.broadcast %4 : vector<1x128xf32> to vector<512x128xf32>
    %6 = arith.addf %3, %5 : vector<512x128xf32>
    %cst_5 = arith.constant 0.000000e+00 : f32
    %7 = vector.broadcast %cst_5 : f32 to vector<512x128xf32>
    %8 = arith.cmpf oge, %6, %7 : vector<512x128xf32>
    %c0_6 = arith.constant 0 : index
    %9 = memref.load %arg1[%c0_6] : memref<2xf32, #tpu.memory_space<smem>>
    %10 = vector.broadcast %9 : f32 to vector<512x128xf32>
    %11 = arith.mulf %10, %6 : vector<512x128xf32>
    %12 = arith.select %8, %6, %11 : vector<512x128xi1>, vector<512x128xf32>
    %13 = arith.truncf %12 : vector<512x128xf32> to vector<512x128xbf16>
    %c0_7 = arith.constant 0 : index
    %c0_8 = arith.constant 0 : index
    %14 = vector.load %arg4[%c0_7, %c0_8] : memref<128x128xbf16, #tpu.memory_space<vmem>>, vector<128x128xbf16>
    %cst_9 = arith.constant dense<0.000000e+00> : vector<512x128xf32>
    %15 = tpu.matmul %13, %14, %cst_9 {dimension_numbers = #tpu.dot_dimension_numbers<[1], [0], [0], [1], [0, 0, 1, 1], [], []>} : vector<512x128xbf16>, vector<128x128xbf16>, vector<512x128xf32> -> vector<512x128xf32>
    %c1 = arith.constant 1 : index
    %c0_10 = arith.constant 0 : index
    %16 = vector.load %arg6[%c1, %c0_10] : memref<3x128xf32, #tpu.memory_space<vmem>>, vector<1x128xf32>
    %17 = vector.broadcast %16 : vector<1x128xf32> to vector<512x128xf32>
    %18 = arith.addf %15, %17 : vector<512x128xf32>
    %cst_11 = arith.constant 0.000000e+00 : f32
    %19 = vector.broadcast %cst_11 : f32 to vector<512x128xf32>
    %20 = arith.cmpf oge, %18, %19 : vector<512x128xf32>
    %c1_12 = arith.constant 1 : index
    %21 = memref.load %arg1[%c1_12] : memref<2xf32, #tpu.memory_space<smem>>
    %22 = vector.broadcast %21 : f32 to vector<512x128xf32>
    %23 = arith.mulf %22, %18 : vector<512x128xf32>
    %24 = arith.select %20, %18, %23 : vector<512x128xi1>, vector<512x128xf32>
    %25 = arith.truncf %24 : vector<512x128xf32> to vector<512x128xbf16>
    %c0_13 = arith.constant 0 : index
    %c0_14 = arith.constant 0 : index
    %26 = vector.load %arg5[%c0_13, %c0_14] : memref<128x128xbf16, #tpu.memory_space<vmem>>, vector<128x128xbf16>
    %cst_15 = arith.constant dense<0.000000e+00> : vector<512x128xf32>
    %27 = tpu.matmul %25, %26, %cst_15 {dimension_numbers = #tpu.dot_dimension_numbers<[1], [0], [0], [1], [0, 0, 1, 1], [], []>} : vector<512x128xbf16>, vector<128x128xbf16>, vector<512x128xf32> -> vector<512x128xf32>
    %c2 = arith.constant 2 : index
    %c0_16 = arith.constant 0 : index
    %28 = vector.load %arg6[%c2, %c0_16] : memref<3x128xf32, #tpu.memory_space<vmem>>, vector<1x128xf32>
    %29 = vector.broadcast %28 : vector<1x128xf32> to vector<512x128xf32>
    %30 = arith.addf %27, %29 : vector<512x128xf32>
    %31 = vector.extract_strided_slice %30 {offsets = [0, 0], sizes = [512, 2], strides = [1, 1]} : vector<512x128xf32> to vector<512x2xf32>
    %c0_17 = arith.constant 0 : index
    %c0_18 = arith.constant 0 : index
    %32 = vector.load %arg7[%c0_17, %c0_18] : memref<512x2xf32, #tpu.memory_space<vmem>>, vector<512x2xf32>
    tpu.vector_store %arg7[%c0_17, %c0_18], %31 {strides = array<i32>} : memref<512x2xf32, #tpu.memory_space<vmem>>, vector<512x2xf32>,
    return
  }
  func.func @transform_0(%arg0: i32, %arg1: memref<2xf32, #tpu.memory_space<smem>>) -> (i32, i32) {
    %c0_i32 = arith.constant 0 : i32
    %c0_i32_0 = arith.constant 0 : i32
    return %arg0, %c0_i32 : i32, i32
  }
  func.func @transform_1(%arg0: i32, %arg1: memref<2xf32, #tpu.memory_space<smem>>) -> (i32, i32) {
    %c0_i32 = arith.constant 0 : i32
    %c0_i32_0 = arith.constant 0 : i32
    %c0_i32_1 = arith.constant 0 : i32
    return %c0_i32, %c0_i32_0 : i32, i32
  }
  func.func @transform_2(%arg0: i32, %arg1: memref<2xf32, #tpu.memory_space<smem>>) -> (i32, i32) {
    %c0_i32 = arith.constant 0 : i32
    %c0_i32_0 = arith.constant 0 : i32
    %c0_i32_1 = arith.constant 0 : i32
    return %c0_i32, %c0_i32_0 : i32, i32
  }
  func.func @transform_3(%arg0: i32, %arg1: memref<2xf32, #tpu.memory_space<smem>>) -> (i32, i32) {
    %c0_i32 = arith.constant 0 : i32
    %c0_i32_0 = arith.constant 0 : i32
    %c0_i32_1 = arith.constant 0 : i32
    return %c0_i32, %c0_i32_0 : i32, i32
  }
  func.func @transform_4(%arg0: i32, %arg1: memref<2xf32, #tpu.memory_space<smem>>) -> (i32, i32) {
    %c0_i32 = arith.constant 0 : i32
    %c0_i32_0 = arith.constant 0 : i32
    %c0_i32_1 = arith.constant 0 : i32
    return %c0_i32, %c0_i32_0 : i32, i32
  }
  func.func @transform_5(%arg0: i32, %arg1: memref<2xf32, #tpu.memory_space<smem>>) -> (i32, i32) {
    %c0_i32 = arith.constant 0 : i32
    %c0_i32_0 = arith.constant 0 : i32
    return %arg0, %c0_i32 : i32, i32
  }
}

</mosaic_0001>

<llo_original>
// kernel: fcn5_forward.1
$region0: #{fcn5_forward.1}
  #allocation0 [shape = 'u32[]', space=smem, size = 0x4, offset = 0x4, fixed_abs, tag = 'smem constant byte address 0x4 - core index']
  #allocation1 [shape = 'u32[144,128]{1,0:T(1,128)}', space=vmem, size = 0x12000, scoped, tag = 'internal scratch']
  #allocation2 [shape = 's32[1]{0}', space=sflag, size = 0x4, scoped, tag = 'scoped memory for fcn5_forward.1']
  #allocation3 [shape = 'u8[512]{0}', space=smem, size = 0x200, scoped, tag = 'prefetched SMEM operand 0']
  %s0 = inlined_call_operand.vmem [shape: f32[2], index: 0, kind: input, shape index: {}]
  %s1 = inlined_call_operand.vmem [shape: f32[1024,8], index: 1, kind: input, shape index: {}]
  %s2 = inlined_call_operand.vmem [shape: bf16[8,128], index: 2, kind: input, shape index: {}]
  %s3 = inlined_call_operand.vmem [shape: bf16[128,128], index: 3, kind: input, shape index: {}]
  %s4 = inlined_call_operand.vmem [shape: bf16[128,128], index: 4, kind: input, shape index: {}]
  %s5 = inlined_call_operand.vmem [shape: f32[3,128], index: 5, kind: input, shape index: {}]
  %s6 = inlined_call_operand.vmem [shape: f32[1024,2], index: 6, kind: output, shape index: {}]
  %s7 = sld [smem:[#allocation0]]
  $region53: #{fcn5_forward.1} parent=0
    _
  %s9 = ssub.s32 1, %s7
  %s10 = scalar_select 0, %s9, %s7
  %s11 = sshll.u32 %s0, 4
  %s12 = int_to_ptr.vmem [resolvable:$true] %s11
  %14 = dma.vmem_to_smem %s12, 16, [#allocation3], [#allocation2]
  %15 = dma.done [#allocation2], 16
  %16 = sfence
  loop: start=0, step=1, limit=4
  $region2: #{fcn5_forward.1} parent=0 // loop_pre_header
    _
  $region3: #{fcn5_forward.1} parent=0 // loop_header
    %s18 = sphi 0, %s22
    %p19 = scmp.ge.s32.totalorder %s18, 4
    %s28 = sphi 0, %s30
    %s31 = sphi 0, %s28
    %s32 = sphi 0, %s31
    %s48 = sphi 0, %s32
    %s52 = sphi 0, %s52
    %s54 = sphi 0, %s52
    %s55 = sphi 0, %s54
    %s69 = sphi 0, %s55
    %s73 = sphi 0, %s73
    %s75 = sphi 0, %s73
    %s76 = sphi 0, %s75
    %s90 = sphi 0, %s76
    %s94 = sphi 0, %s94
    %s96 = sphi 0, %s94
    %s97 = sphi 0, %s96
    %s111 = sphi 0, %s97
    %s115 = sphi 0, %s115
    %s117 = sphi 0, %s115
    %s118 = sphi 0, %s117
    %s132 = sphi 0, %s118
    %s138 = sphi 0, %s140
    %s141 = sphi 0, %s138
    %s142 = sphi 0, %s141
    %s158 = sphi 0, %s142
  $region4: #{fcn5_forward.1} parent=0 // loop_header_branch
    %21 = sbr.rel (%p19) target = $region8
  $region5: #{fcn5_forward.1} parent=0 // loop_body
    %s23 = ssub.s32 %s18, 1
    %s24 = ssub.s32 %s18, 2
    %s25 = sadd.s32 %s18, 1
    %s26 = ssub.s32 %s18, %s25
    %p27 = scmp.eq.s32.totalorder %s26, 0
    %s29 = sadd.s32 %s28, 1
    %s30 = scalar_select %p27, %s28, %s29
    %p33 = pneg %p27
    %p34 = scmp.eq.s32.totalorder %s18, 1
    %p35 = por %p33, %p34
    %p36 = scmp.ne.s32.totalorder %s28, %s31
    %p37 = scmp.eq.s32.totalorder %s18, 0
    %p38 = por %p36, %p37
    %p39 = scmp.ne.s32.totalorder %s28, %s31
    %p40 = scmp.eq.s32.totalorder %s23, 1
    %p41 = por %p39, %p40
    %p42 = scmp.ne.s32.totalorder %s31, %s32
    %p43 = scmp.eq.s32.totalorder %s23, 0
    %p44 = por %p42, %p43
    %p45 = scmp.ne.s32.totalorder %s31, %s32
    %p46 = scmp.eq.s32.totalorder %s24, 1
    %p47 = por %p45, %p46
    %p49 = scmp.ne.s32.totalorder %s32, %s48
    %p50 = scmp.eq.s32.totalorder %s24, 0
    %p51 = por %p49, %p50
    %s53 = sadd.s32 %s52, 1
    %p56 = scmp.eq.s32.totalorder %s18, 1
    %p57 = scmp.ne.s32.totalorder %s52, %s54
    %p58 = scmp.eq.s32.totalorder %s18, 0
    %p59 = por %p57, %p58
    %p60 = scmp.ne.s32.totalorder %s52, %s54
    %p61 = scmp.eq.s32.totalorder %s23, 1
    %p62 = por %p60, %p61
    %p63 = scmp.ne.s32.totalorder %s54, %s55
    %p64 = scmp.eq.s32.totalorder %s23, 0
    %p65 = por %p63, %p64
    %p66 = scmp.ne.s32.totalorder %s54, %s55
    %p67 = scmp.eq.s32.totalorder %s24, 1
    %p68 = por %p66, %p67
    %p70 = scmp.ne.s32.totalorder %s55, %s69
    %p71 = scmp.eq.s32.totalorder %s24, 0
    %p72 = por %p70, %p71
    %s74 = sadd.s32 %s73, 1
    %p77 = scmp.eq.s32.totalorder %s18, 1
    %p78 = scmp.ne.s32.totalorder %s73, %s75
    %p79 = scmp.eq.s32.totalorder %s18, 0
    %p80 = por %p78, %p79
    %p81 = scmp.ne.s32.totalorder %s73, %s75
    %p82 = scmp.eq.s32.totalorder %s23, 1
    %p83 = por %p81, %p82
    %p84 = scmp.ne.s32.totalorder %s75, %s76
    %p85 = scmp.eq.s32.totalorder %s23, 0
    %p86 = por %p84, %p85
    %p87 = scmp.ne.s32.totalorder %s75, %s76
    %p88 = scmp.eq.s32.totalorder %s24, 1
    %p89 = por %p87, %p88
    %p91 = scmp.ne.s32.totalorder %s76, %s90
    %p92 = scmp.eq.s32.totalorder %s24, 0
    %p93 = por %p91, %p92
    %s95 = sadd.s32 %s94, 1
    %p98 = scmp.eq.s32.totalorder %s18, 1
    %p99 = scmp.ne.s32.totalorder %s94, %s96
    %p100 = scmp.eq.s32.totalorder %s18, 0
    %p101 = por %p99, %p100
    %p102 = scmp.ne.s32.totalorder %s94, %s96
    %p103 = scmp.eq.s32.totalorder %s23, 1
    %p104 = por %p102, %p103
    %p105 = scmp.ne.s32.totalorder %s96, %s97
    %p106 = scmp.eq.s32.totalorder %s23, 0
    %p107 = por %p105, %p106
    %p108 = scmp.ne.s32.totalorder %s96, %s97
    %p109 = scmp.eq.s32.totalorder %s24, 1
    %p110 = por %p108, %p109
    %p112 = scmp.ne.s32.totalorder %s97, %s111
    %p113 = scmp.eq.s32.totalorder %s24, 0
    %p114 = por %p112, %p113
    %s116 = sadd.s32 %s115, 1
    %p119 = scmp.eq.s32.totalorder %s18, 1
    %p120 = scmp.ne.s32.totalorder %s115, %s117
    %p121 = scmp.eq.s32.totalorder %s18, 0
    %p122 = por %p120, %p121
    %p123 = scmp.ne.s32.totalorder %s115, %s117
    %p124 = scmp.eq.s32.totalorder %s23, 1
    %p125 = por %p123, %p124
    %p126 = scmp.ne.s32.totalorder %s117, %s118
    %p127 = scmp.eq.s32.totalorder %s23, 0
    %p128 = por %p126, %p127
    %p129 = scmp.ne.s32.totalorder %s117, %s118
    %p130 = scmp.eq.s32.totalorder %s24, 1
    %p131 = por %p129, %p130
    %p133 = scmp.ne.s32.totalorder %s118, %s132
    %p134 = scmp.eq.s32.totalorder %s24, 0
    %p135 = por %p133, %p134
    %s136 = ssub.s32 %s18, %s25
    %p137 = scmp.eq.s32.totalorder %s136, 0
    %s139 = sadd.s32 %s138, 1
    %s140 = scalar_select %p137, %s138, %s139
    %p143 = pneg %p137
    %p144 = scmp.eq.s32.totalorder %s18, 1
    %p145 = por %p143, %p144
    %p146 = scmp.ne.s32.totalorder %s138, %s141
    %p147 = scmp.eq.s32.totalorder %s18, 0
    %p148 = por %p146, %p147
    %p149 = scmp.ne.s32.totalorder %s138, %s141
    %p150 = scmp.eq.s32.totalorder %s23, 1
    %p151 = por %p149, %p150
    %p152 = scmp.ne.s32.totalorder %s141, %s142
    %p153 = scmp.eq.s32.totalorder %s23, 0
    %p154 = por %p152, %p153
    %p155 = scmp.ne.s32.totalorder %s141, %s142
    %p156 = scmp.eq.s32.totalorder %s24, 1
    %p157 = por %p155, %p156
    %p159 = scmp.ne.s32.totalorder %s142, %s158
    %p160 = scmp.eq.s32.totalorder %s24, 0
    %p161 = por %p159, %p160
    %p162 = scmp.le.s32.totalorder 1, %s18
    %p163 = scmp.lt.s32.totalorder %s18, 3
    %p164 = pnand %p162, %p163
    %p165 = pneg %p164
    // Predicated region
    $region9: #{fcn5_forward.1} parent=5 // pred_check
      _
    $region10: #{fcn5_forward.1} parent=5 // pred_check_branch
      %167 = sbr.rel (%p164) target = $region12
    $region11: #{fcn5_forward.1} parent=5 // pred_region
      %s168 = ssub.s32 %s18, 1
      // Predicated region
      $region13: #{fcn5_forward.1} parent=11 // pred_check
        %p169 = pneg %p65
      $region14: #{fcn5_forward.1} parent=11 // pred_check_branch
        %171 = sbr.rel (%p169) target = $region16
      $region15: #{fcn5_forward.1} parent=11 // pred_region
        _
      $region16: #{fcn5_forward.1} parent=11 // pred_fallthru
        _
      // Predicated region
      $region17: #{fcn5_forward.1} parent=11 // pred_check
        %p172 = pneg %p86
      $region18: #{fcn5_forward.1} parent=11 // pred_check_branch
        %174 = sbr.rel (%p172) target = $region20
      $region19: #{fcn5_forward.1} parent=11 // pred_region
        _
      $region20: #{fcn5_forward.1} parent=11 // pred_fallthru
        _
      // Predicated region
      $region21: #{fcn5_forward.1} parent=11 // pred_check
        %p175 = pneg %p107
      $region22: #{fcn5_forward.1} parent=11 // pred_check_branch
        %177 = sbr.rel (%p175) target = $region24
      $region23: #{fcn5_forward.1} parent=11 // pred_region
        _
      $region24: #{fcn5_forward.1} parent=11 // pred_fallthru
        _
      // Predicated region
      $region25: #{fcn5_forward.1} parent=11 // pred_check
        %p178 = pneg %p128
      $region26: #{fcn5_forward.1} parent=11 // pred_check_branch
        %180 = sbr.rel (%p178) target = $region28
      $region27: #{fcn5_forward.1} parent=11 // pred_region
        _
      $region28: #{fcn5_forward.1} parent=11 // pred_fallthru
        _
    $region12: #{fcn5_forward.1} parent=5 // pred_fallthru
      _
    %p181 = scmp.lt.s32.totalorder %s18, 2
    // Predicated region
    $region29: #{fcn5_forward.1} parent=5 // pred_check
      %p182 = pneg %p181
    $region30: #{fcn5_forward.1} parent=5 // pred_check_branch
      %184 = sbr.rel (%p182) target = $region32
    $region31: #{fcn5_forward.1} parent=5 // pred_region
      // Predicated region
      $region33: #{fcn5_forward.1} parent=31 // pred_check
        %p185 = pneg %p38
      $region34: #{fcn5_forward.1} parent=31 // pred_check_branch
        %187 = sbr.rel (%p185) target = $region36
      $region35: #{fcn5_forward.1} parent=31 // pred_region
        %s188 = smul.u32 64, %s18
        %p189 = scmp.lt.s32.totalorder %s188, 127
        %s190 = scalar_select %p189, %s188, 127
        %s191 = smul.addr %s190, 8
        %s192 = scalar_lea.vmem %s1, %s191
        %s193 = smul.u32 64, %s18
      $region36: #{fcn5_forward.1} parent=31 // pred_fallthru
        _
    $region32: #{fcn5_forward.1} parent=5 // pred_fallthru
      _
    %p194 = scmp.le.s32.totalorder 1, %s18
    %p195 = scmp.lt.s32.totalorder %s18, 3
    %p196 = pnand %p194, %p195
    %p197 = pneg %p196
    // Predicated region
    $region37: #{fcn5_forward.1} parent=5 // pred_check
      _
    $region38: #{fcn5_forward.1} parent=5 // pred_check_branch
      %199 = sbr.rel (%p196) target = $region40
    $region39: #{fcn5_forward.1} parent=5 // pred_region
      %s200 = ssub.s32 %s18, 1
      %s201 = smul.u32 64, %s23
      %p202 = scmp.lt.s32.totalorder %s201, 127
      %s203 = scalar_select %p202, %s201, 127
      %s204 = smul.addr %s203, 8
      %s205 = scalar_lea.vmem %s1, %s204
      %p206 = pneg %p44
      %p207 = pneg %p41
      %p208 = pneg %p65
      %p209 = pneg %p62
      %p210 = pneg %p86
      %p211 = pneg %p83
      %p212 = pneg %p107
      %p213 = pneg %p104
      %p214 = pneg %p128
      %p215 = pneg %p125
      %p216 = pneg %p154
      %p217 = pneg %p151
      %s218 = smul.u32 64, %s23
      %p219 = scmp.lt.s32.totalorder %s218, 127
      %s220 = scalar_select %p219, %s218, 127
      %s221 = smul.addr %s220, 8
      %s222 = scalar_lea.vmem %s6, %s221
      %s223 = smul.u32 64, %s23
      %p224 = scmp.lt.s32.totalorder %s223, 127
      %s225 = scalar_select %p224, %s223, 127
      %s226 = smul.addr %s225, 8
      %s227 = scalar_lea.vmem %s1, %s226
      %s228 = smul.u32 64, %s23
      %s229 = smul.u32 64, %s23
      %p230 = scmp.lt.s32.totalorder %s229, 127
      %s231 = scalar_select %p230, %s229, 127
      %s232 = smul.addr %s231, 8
      %s233 = scalar_lea.vmem %s6, %s232
      %s234 = smul.u32 64, %s23
      %v236 = vld [vmem:[%s227] sm:$0xff]
      %v237 = vld [vmem:[%s227 + $0x8] sm:$0xff]
      %v238 = vld [vmem:[%s227 + $0x10] sm:$0xff]
      %v239 = vld [vmem:[%s227 + $0x18] sm:$0xff]
      %v240 = vld [vmem:[%s227 + $0x20] sm:$0xff]
      %v241 = vld [vmem:[%s227 + $0x28] sm:$0xff]
      %v242 = vld [vmem:[%s227 + $0x30] sm:$0xff]
      %v243 = vld [vmem:[%s227 + $0x38] sm:$0xff]
      %v244 = vld [vmem:[%s227 + $0x40] sm:$0xff]
      %v245 = vld [vmem:[%s227 + $0x48] sm:$0xff]
      %v246 = vld [vmem:[%s227 + $0x50] sm:$0xff]
      %v247 = vld [vmem:[%s227 + $0x58] sm:$0xff]
      %v248 = vld [vmem:[%s227 + $0x60] sm:$0xff]
      %v249 = vld [vmem:[%s227 + $0x68] sm:$0xff]
      %v250 = vld [vmem:[%s227 + $0x70] sm:$0xff]
      %v251 = vld [vmem:[%s227 + $0x78] sm:$0xff]
      %v252 = vld [vmem:[%s227 + $0x80] sm:$0xff]
      %v253 = vld [vmem:[%s227 + $0x88] sm:$0xff]
      %v254 = vld [vmem:[%s227 + $0x90] sm:$0xff]
      %v255 = vld [vmem:[%s227 + $0x98] sm:$0xff]
      %v256 = vld [vmem:[%s227 + $0xa0] sm:$0xff]
      %v257 = vld [vmem:[%s227 + $0xa8] sm:$0xff]
      %v258 = vld [vmem:[%s227 + $0xb0] sm:$0xff]
      %v259 = vld [vmem:[%s227 + $0xb8] sm:$0xff]
      %v260 = vld [vmem:[%s227 + $0xc0] sm:$0xff]
      %v261 = vld [vmem:[%s227 + $0xc8] sm:$0xff]
      %v262 = vld [vmem:[%s227 + $0xd0] sm:$0xff]
      %v263 = vld [vmem:[%s227 + $0xd8] sm:$0xff]
      %v264 = vld [vmem:[%s227 + $0xe0] sm:$0xff]
      %v265 = vld [vmem:[%s227 + $0xe8] sm:$0xff]
      %v266 = vld [vmem:[%s227 + $0xf0] sm:$0xff]
      %v267 = vld [vmem:[%s227 + $0xf8] sm:$0xff]
      %v268 = vld [vmem:[%s227 + $0x100] sm:$0xff]
      %v269 = vld [vmem:[%s227 + $0x108] sm:$0xff]
      %v270 = vld [vmem:[%s227 + $0x110] sm:$0xff]
      %v271 = vld [vmem:[%s227 + $0x118] sm:$0xff]
      %v272 = vld [vmem:[%s227 + $0x120] sm:$0xff]
      %v273 = vld [vmem:[%s227 + $0x128] sm:$0xff]
      %v274 = vld [vmem:[%s227 + $0x130] sm:$0xff]
      %v275 = vld [vmem:[%s227 + $0x138] sm:$0xff]
      %v276 = vld [vmem:[%s227 + $0x140] sm:$0xff]
      %v277 = vld [vmem:[%s227 + $0x148] sm:$0xff]
      %v278 = vld [vmem:[%s227 + $0x150] sm:$0xff]
      %v279 = vld [vmem:[%s227 + $0x158] sm:$0xff]
      %v280 = vld [vmem:[%s227 + $0x160] sm:$0xff]
      %v281 = vld [vmem:[%s227 + $0x168] sm:$0xff]
      %v282 = vld [vmem:[%s227 + $0x170] sm:$0xff]
      %v283 = vld [vmem:[%s227 + $0x178] sm:$0xff]
      %v284 = vld [vmem:[%s227 + $0x180] sm:$0xff]
      %v285 = vld [vmem:[%s227 + $0x188] sm:$0xff]
      %v286 = vld [vmem:[%s227 + $0x190] sm:$0xff]
      %v287 = vld [vmem:[%s227 + $0x198] sm:$0xff]
      %v288 = vld [vmem:[%s227 + $0x1a0] sm:$0xff]
      %v289 = vld [vmem:[%s227 + $0x1a8] sm:$0xff]
      %v290 = vld [vmem:[%s227 + $0x1b0] sm:$0xff]
      %v291 = vld [vmem:[%s227 + $0x1b8] sm:$0xff]
      %v292 = vld [vmem:[%s227 + $0x1c0] sm:$0xff]
      %v293 = vld [vmem:[%s227 + $0x1c8] sm:$0xff]
      %v294 = vld [vmem:[%s227 + $0x1d0] sm:$0xff]
      %v295 = vld [vmem:[%s227 + $0x1d8] sm:$0xff]
      %v296 = vld [vmem:[%s227 + $0x1e0] sm:$0xff]
      %v297 = vld [vmem:[%s227 + $0x1e8] sm:$0xff]
      %v298 = vld [vmem:[%s227 + $0x1f0] sm:$0xff]
      %v299 = vld [vmem:[%s227 + $0x1f8] sm:$0xff]
      %v300 = vpack.c.bf16 %v237, %v236
      %v301 = vpack.c.bf16 %v239, %v238
      %v302 = vpack.c.bf16 %v241, %v240
      %v303 = vpack.c.bf16 %v243, %v242
      %v304 = vpack.c.bf16 %v245, %v244
      %v305 = vpack.c.bf16 %v247, %v246
      %v306 = vpack.c.bf16 %v249, %v248
      %v307 = vpack.c.bf16 %v251, %v250
      %v308 = vpack.c.bf16 %v253, %v252
      %v309 = vpack.c.bf16 %v255, %v254
      %v310 = vpack.c.bf16 %v257, %v256
      %v311 = vpack.c.bf16 %v259, %v258
      %v312 = vpack.c.bf16 %v261, %v260
      %v313 = vpack.c.bf16 %v263, %v262
      %v314 = vpack.c.bf16 %v265, %v264
      %v315 = vpack.c.bf16 %v267, %v266
      %v316 = vpack.c.bf16 %v269, %v268
      %v317 = vpack.c.bf16 %v271, %v270
      %v318 = vpack.c.bf16 %v273, %v272
      %v319 = vpack.c.bf16 %v275, %v274
      %v320 = vpack.c.bf16 %v277, %v276
      %v321 = vpack.c.bf16 %v279, %v278
      %v322 = vpack.c.bf16 %v281, %v280
      %v323 = vpack.c.bf16 %v283, %v282
      %v324 = vpack.c.bf16 %v285, %v284
      %v325 = vpack.c.bf16 %v287, %v286
      %v326 = vpack.c.bf16 %v289, %v288
      %v327 = vpack.c.bf16 %v291, %v290
      %v328 = vpack.c.bf16 %v293, %v292
      %v329 = vpack.c.bf16 %v295, %v294
      %v330 = vpack.c.bf16 %v297, %v296
      %v331 = vpack.c.bf16 %v299, %v298
      %v332 = vld [vmem:[%s2] sm:$0xf]
      %v333 = vld [vmem:[%s5] sm:$0x1]
      %v334 = vlaneseq
      %v335 = vshrl.u32 %v334, 7
      %v336 = vsub.s32 0, %v335
      %v337 = vrot.slane %v333, %v336
      %vm338 = vcmask 64512
      %v340 = vsel %vm338, %v300, 0
      %v343 = vsel %vm338, %v301, 0
      %v346 = vsel %vm338, %v302, 0
      %v349 = vsel %vm338, %v303, 0
      %v352 = vsel %vm338, %v304, 0
      %v355 = vsel %vm338, %v305, 0
      %v358 = vsel %vm338, %v306, 0
      %v361 = vsel %vm338, %v307, 0
      %v364 = vsel %vm338, %v308, 0
      %v367 = vsel %vm338, %v309, 0
      %v370 = vsel %vm338, %v310, 0
      %v373 = vsel %vm338, %v311, 0
      %v376 = vsel %vm338, %v312, 0
      %v379 = vsel %vm338, %v313, 0
      %v382 = vsel %vm338, %v314, 0
      %v385 = vsel %vm338, %v315, 0
      %v388 = vsel %vm338, %v316, 0
      %v391 = vsel %vm338, %v317, 0
      %v394 = vsel %vm338, %v318, 0
      %v397 = vsel %vm338, %v319, 0
      %v400 = vsel %vm338, %v320, 0
      %v403 = vsel %vm338, %v321, 0
      %v406 = vsel %vm338, %v322, 0
      %v409 = vsel %vm338, %v323, 0
      %v412 = vsel %vm338, %v324, 0
      %v415 = vsel %vm338, %v325, 0
      %v418 = vsel %vm338, %v326, 0
      %v421 = vsel %vm338, %v327, 0
      %v424 = vsel %vm338, %v328, 0
      %v427 = vsel %vm338, %v329, 0
      %v430 = vsel %vm338, %v330, 0
      %v433 = vsel %vm338, %v331, 0
      %vm435 = vcmask 1043456
      %v437 = vsel %vm435, %v332, 0
      %439 = vmatprep.subr.bf16.mxu0 0
      %440 = vmatpush1.bf16.msra.mxu0 0
      %441 = vmatprep.subr.bf16.mxu0 0
      %442 = vmatpush1.bf16.msra.mxu0 0
      %443 = vmatprep.subr.bf16.mxu0 0
      %444 = vmatpush1.bf16.msra.mxu0 0
      %445 = vmatprep.subr.bf16.mxu0 0
      %446 = vmatpush1.bf16.msra.mxu0 0
      %447 = vmatprep.subr.bf16.mxu0 0
      %448 = vmatpush1.bf16.msra.mxu0 0
      %449 = vmatprep.subr.bf16.mxu0 0
      %450 = vmatpush1.bf16.msra.mxu0 0
      %451 = vmatprep.subr.bf16.mxu0 0
      %452 = vmatpush1.bf16.msra.mxu0 0
      %453 = vmatprep.subr.bf16.mxu0 0
      %454 = vmatpush1.bf16.msra.mxu0 %v437
      %455 = vmatprep.subr.bf16.mxu0 0
      %456 = vmatpush2.bf16.msra.mxu0 0
      %457 = vmatprep.subr.bf16.mxu0 0
      %458 = vmatpush2.bf16.msra.mxu0 0
      %459 = vmatprep.subr.bf16.mxu0 0
      %460 = vmatpush2.bf16.msra.mxu0 0
      %461 = vmatprep.subr.bf16.mxu0 0
      %462 = vmatpush2.bf16.msra.mxu0 0
      %463 = vmatprep.subr.bf16.mxu0 0
      %464 = vmatpush2.bf16.msra.mxu0 0
      %465 = vmatprep.subr.bf16.mxu0 0
      %466 = vmatpush2.bf16.msra.mxu0 0
      %467 = vmatprep.subr.bf16.mxu0 0
      %468 = vmatpush2.bf16.msra.mxu0 0
      %469 = vmatprep.subr.bf16.mxu0 0
      %470 = vmatpush2.bf16.msra.mxu0 0
      %471 = vmatprep.mubr.bf16.mxu0 0
      %472 = vmatmul.mubr.bf16.gmra.mxu0 %v340
      %v473 = vpop.f32.mrf.mxu0
      %v474 = vadd.f32 %v337, %v473
      %v475 = vpop.f32.mrf.mxu0
      %v476 = vpop.f32.mrf.mxu0
      %v477 = vadd.f32 %v337, %v476
      %v478 = vpop.f32.mrf.mxu0
      %479 = vmatprep.mubr.bf16.mxu0 0
      %480 = vmatmul.mubr.bf16.gmra.mxu0 %v343
      %v481 = vpop.f32.mrf.mxu0
      %v482 = vadd.f32 %v337, %v481
      %v483 = vpop.f32.mrf.mxu0
      %v484 = vpop.f32.mrf.mxu0
      %v485 = vadd.f32 %v337, %v484
      %v486 = vpop.f32.mrf.mxu0
      %487 = vmatprep.mubr.bf16.mxu0 0
      %488 = vmatmul.mubr.bf16.gmra.mxu0 %v346
      %v489 = vpop.f32.mrf.mxu0
      %v490 = vadd.f32 %v337, %v489
      %v491 = vpop.f32.mrf.mxu0
      %v492 = vpop.f32.mrf.mxu0
      %v493 = vadd.f32 %v337, %v492
      %v494 = vpop.f32.mrf.mxu0
      %495 = vmatprep.mubr.bf16.mxu0 0
      %496 = vmatmul.mubr.bf16.gmra.mxu0 %v349
      %v497 = vpop.f32.mrf.mxu0
      %v498 = vadd.f32 %v337, %v497
      %v499 = vpop.f32.mrf.mxu0
      %v500 = vpop.f32.mrf.mxu0
      %v501 = vadd.f32 %v337, %v500
      %v502 = vpop.f32.mrf.mxu0
      %503 = vmatprep.mubr.bf16.mxu0 0
      %504 = vmatmul.mubr.bf16.gmra.mxu0 %v352
      %v505 = vpop.f32.mrf.mxu0
      %v506 = vadd.f32 %v337, %v505
      %v507 = vpop.f32.mrf.mxu0
      %v508 = vpop.f32.mrf.mxu0
      %v509 = vadd.f32 %v337, %v508
      %v510 = vpop.f32.mrf.mxu0
      %511 = vmatprep.mubr.bf16.mxu0 0
      %512 = vmatmul.mubr.bf16.gmra.mxu0 %v355
      %v513 = vpop.f32.mrf.mxu0
      %v514 = vadd.f32 %v337, %v513
      %v515 = vpop.f32.mrf.mxu0
      %v516 = vpop.f32.mrf.mxu0
      %v517 = vadd.f32 %v337, %v516
      %v518 = vpop.f32.mrf.mxu0
      %519 = vmatprep.mubr.bf16.mxu0 0
      %520 = vmatmul.mubr.bf16.gmra.mxu0 %v358
      %v521 = vpop.f32.mrf.mxu0
      %v522 = vadd.f32 %v337, %v521
      %v523 = vpop.f32.mrf.mxu0
      %v524 = vpop.f32.mrf.mxu0
      %v525 = vadd.f32 %v337, %v524
      %v526 = vpop.f32.mrf.mxu0
      %527 = vmatprep.mubr.bf16.mxu0 0
      %528 = vmatmul.mubr.bf16.gmra.mxu0 %v361
      %v529 = vpop.f32.mrf.mxu0
      %v530 = vadd.f32 %v337, %v529
      %v531 = vpop.f32.mrf.mxu0
      %v532 = vpop.f32.mrf.mxu0
      %v533 = vadd.f32 %v337, %v532
      %v534 = vpop.f32.mrf.mxu0
      %535 = vmatprep.mubr.bf16.mxu0 0
      %536 = vmatmul.mubr.bf16.gmra.mxu0 %v364
      %v537 = vpop.f32.mrf.mxu0
      %v538 = vadd.f32 %v337, %v537
      %v539 = vpop.f32.mrf.mxu0
      %v540 = vpop.f32.mrf.mxu0
      %v541 = vadd.f32 %v337, %v540
      %v542 = vpop.f32.mrf.mxu0
      %543 = vmatprep.mubr.bf16.mxu0 0
      %544 = vmatmul.mubr.bf16.gmra.mxu0 %v367
      %v545 = vpop.f32.mrf.mxu0
      %v546 = vadd.f32 %v337, %v545
      %v547 = vpop.f32.mrf.mxu0
      %v548 = vpop.f32.mrf.mxu0
      %v549 = vadd.f32 %v337, %v548
      %v550 = vpop.f32.mrf.mxu0
      %551 = vmatprep.mubr.bf16.mxu0 0
      %552 = vmatmul.mubr.bf16.gmra.mxu0 %v370
      %v553 = vpop.f32.mrf.mxu0
      %v554 = vadd.f32 %v337, %v553
      %v555 = vpop.f32.mrf.mxu0
      %v556 = vpop.f32.mrf.mxu0
      %v557 = vadd.f32 %v337, %v556
      %v558 = vpop.f32.mrf.mxu0
      %559 = vmatprep.mubr.bf16.mxu0 0
      %560 = vmatmul.mubr.bf16.gmra.mxu0 %v373
      %v561 = vpop.f32.mrf.mxu0
      %v562 = vadd.f32 %v337, %v561
      %v563 = vpop.f32.mrf.mxu0
      %v564 = vpop.f32.mrf.mxu0
      %v565 = vadd.f32 %v337, %v564
      %v566 = vpop.f32.mrf.mxu0
      %567 = vmatprep.mubr.bf16.mxu0 0
      %568 = vmatmul.mubr.bf16.gmra.mxu0 %v376
      %v569 = vpop.f32.mrf.mxu0
      %v570 = vadd.f32 %v337, %v569
      %v571 = vpop.f32.mrf.mxu0
      %v572 = vpop.f32.mrf.mxu0
      %v573 = vadd.f32 %v337, %v572
      %v574 = vpop.f32.mrf.mxu0
      %575 = vmatprep.mubr.bf16.mxu0 0
      %576 = vmatmul.mubr.bf16.gmra.mxu0 %v379
      %v577 = vpop.f32.mrf.mxu0
      %v578 = vadd.f32 %v337, %v577
      %v579 = vpop.f32.mrf.mxu0
      %v580 = vpop.f32.mrf.mxu0
      %v581 = vadd.f32 %v337, %v580
      %v582 = vpop.f32.mrf.mxu0
      %583 = vmatprep.mubr.bf16.mxu0 0
      %584 = vmatmul.mubr.bf16.gmra.mxu0 %v382
      %v585 = vpop.f32.mrf.mxu0
      %v586 = vadd.f32 %v337, %v585
      %v587 = vpop.f32.mrf.mxu0
      %v588 = vpop.f32.mrf.mxu0
      %v589 = vadd.f32 %v337, %v588
      %v590 = vpop.f32.mrf.mxu0
      %591 = vmatprep.mubr.bf16.mxu0 0
      %592 = vmatmul.mubr.bf16.gmra.mxu0 %v385
      %v593 = vpop.f32.mrf.mxu0
      %v594 = vadd.f32 %v337, %v593
      %v595 = vpop.f32.mrf.mxu0
      %v596 = vpop.f32.mrf.mxu0
      %v597 = vadd.f32 %v337, %v596
      %v598 = vpop.f32.mrf.mxu0
      %599 = vmatprep.mubr.bf16.mxu0 0
      %600 = vmatmul.mubr.bf16.gmra.mxu0 %v388
      %v601 = vpop.f32.mrf.mxu0
      %v602 = vadd.f32 %v337, %v601
      %v603 = vpop.f32.mrf.mxu0
      %v604 = vpop.f32.mrf.mxu0
      %v605 = vadd.f32 %v337, %v604
      %v606 = vpop.f32.mrf.mxu0
      %607 = vmatprep.mubr.bf16.mxu0 0
      %608 = vmatmul.mubr.bf16.gmra.mxu0 %v391
      %v609 = vpop.f32.mrf.mxu0
      %v610 = vadd.f32 %v337, %v609
      %v611 = vpop.f32.mrf.mxu0
      %v612 = vpop.f32.mrf.mxu0
      %v613 = vadd.f32 %v337, %v612
      %v614 = vpop.f32.mrf.mxu0
      %615 = vmatprep.mubr.bf16.mxu0 0
      %616 = vmatmul.mubr.bf16.gmra.mxu0 %v394
      %v617 = vpop.f32.mrf.mxu0
      %v618 = vadd.f32 %v337, %v617
      %v619 = vpop.f32.mrf.mxu0
      %v620 = vpop.f32.mrf.mxu0
      %v621 = vadd.f32 %v337, %v620
      %v622 = vpop.f32.mrf.mxu0
      %623 = vmatprep.mubr.bf16.mxu0 0
      %624 = vmatmul.mubr.bf16.gmra.mxu0 %v397
      %v625 = vpop.f32.mrf.mxu0
      %v626 = vadd.f32 %v337, %v625
      %v627 = vpop.f32.mrf.mxu0
      %v628 = vpop.f32.mrf.mxu0
      %v629 = vadd.f32 %v337, %v628
      %v630 = vpop.f32.mrf.mxu0
      %631 = vmatprep.mubr.bf16.mxu0 0
      %632 = vmatmul.mubr.bf16.gmra.mxu0 %v400
      %v633 = vpop.f32.mrf.mxu0
      %v634 = vadd.f32 %v337, %v633
      %v635 = vpop.f32.mrf.mxu0
      %v636 = vpop.f32.mrf.mxu0
      %v637 = vadd.f32 %v337, %v636
      %v638 = vpop.f32.mrf.mxu0
      %639 = vmatprep.mubr.bf16.mxu0 0
      %640 = vmatmul.mubr.bf16.gmra.mxu0 %v403
      %v641 = vpop.f32.mrf.mxu0
      %v642 = vadd.f32 %v337, %v641
      %v643 = vpop.f32.mrf.mxu0
      %v644 = vpop.f32.mrf.mxu0
      %v645 = vadd.f32 %v337, %v644
      %v646 = vpop.f32.mrf.mxu0
      %647 = vmatprep.mubr.bf16.mxu0 0
      %648 = vmatmul.mubr.bf16.gmra.mxu0 %v406
      %v649 = vpop.f32.mrf.mxu0
      %v650 = vadd.f32 %v337, %v649
      %v651 = vpop.f32.mrf.mxu0
      %v652 = vpop.f32.mrf.mxu0
      %v653 = vadd.f32 %v337, %v652
      %v654 = vpop.f32.mrf.mxu0
      %655 = vmatprep.mubr.bf16.mxu0 0
      %656 = vmatmul.mubr.bf16.gmra.mxu0 %v409
      %v657 = vpop.f32.mrf.mxu0
      %v658 = vadd.f32 %v337, %v657
      %v659 = vpop.f32.mrf.mxu0
      %v660 = vpop.f32.mrf.mxu0
      %v661 = vadd.f32 %v337, %v660
      %v662 = vpop.f32.mrf.mxu0
      %663 = vmatprep.mubr.bf16.mxu0 0
      %664 = vmatmul.mubr.bf16.gmra.mxu0 %v412
      %v665 = vpop.f32.mrf.mxu0
      %v666 = vadd.f32 %v337, %v665
      %v667 = vpop.f32.mrf.mxu0
      %v668 = vpop.f32.mrf.mxu0
      %v669 = vadd.f32 %v337, %v668
      %v670 = vpop.f32.mrf.mxu0
      %671 = vmatprep.mubr.bf16.mxu0 0
      %672 = vmatmul.mubr.bf16.gmra.mxu0 %v415
      %v673 = vpop.f32.mrf.mxu0
      %v674 = vadd.f32 %v337, %v673
      %v675 = vpop.f32.mrf.mxu0
      %v676 = vpop.f32.mrf.mxu0
      %v677 = vadd.f32 %v337, %v676
      %v678 = vpop.f32.mrf.mxu0
      %679 = vmatprep.mubr.bf16.mxu0 0
      %680 = vmatmul.mubr.bf16.gmra.mxu0 %v418
      %v681 = vpop.f32.mrf.mxu0
      %v682 = vadd.f32 %v337, %v681
      %v683 = vpop.f32.mrf.mxu0
      %v684 = vpop.f32.mrf.mxu0
      %v685 = vadd.f32 %v337, %v684
      %v686 = vpop.f32.mrf.mxu0
      %687 = vmatprep.mubr.bf16.mxu0 0
      %688 = vmatmul.mubr.bf16.gmra.mxu0 %v421
      %v689 = vpop.f32.mrf.mxu0
      %v690 = vadd.f32 %v337, %v689
      %v691 = vpop.f32.mrf.mxu0
      %v692 = vpop.f32.mrf.mxu0
      %v693 = vadd.f32 %v337, %v692
      %v694 = vpop.f32.mrf.mxu0
      %695 = vmatprep.mubr.bf16.mxu0 0
      %696 = vmatmul.mubr.bf16.gmra.mxu0 %v424
      %v697 = vpop.f32.mrf.mxu0
      %v698 = vadd.f32 %v337, %v697
      %v699 = vpop.f32.mrf.mxu0
      %v700 = vpop.f32.mrf.mxu0
      %v701 = vadd.f32 %v337, %v700
      %v702 = vpop.f32.mrf.mxu0
      %703 = vmatprep.mubr.bf16.mxu0 0
      %704 = vmatmul.mubr.bf16.gmra.mxu0 %v427
      %v705 = vpop.f32.mrf.mxu0
      %v706 = vadd.f32 %v337, %v705
      %v707 = vpop.f32.mrf.mxu0
      %v708 = vpop.f32.mrf.mxu0
      %v709 = vadd.f32 %v337, %v708
      %v710 = vpop.f32.mrf.mxu0
      %711 = vmatprep.mubr.bf16.mxu0 0
      %712 = vmatmul.mubr.bf16.gmra.mxu0 %v430
      %v713 = vpop.f32.mrf.mxu0
      %v714 = vadd.f32 %v337, %v713
      %v715 = vpop.f32.mrf.mxu0
      %v716 = vpop.f32.mrf.mxu0
      %v717 = vadd.f32 %v337, %v716
      %v718 = vpop.f32.mrf.mxu0
      %719 = vmatprep.mubr.bf16.mxu0 0
      %720 = vmatmul.mubr.bf16.gmra.mxu0 %v433
      %v721 = vpop.f32.mrf.mxu0
      %v722 = vadd.f32 %v337, %v721
      %v723 = vpop.f32.mrf.mxu0
      %v724 = vpop.f32.mrf.mxu0
      %v725 = vadd.f32 %v337, %v724
      %v726 = vpop.f32.mrf.mxu0
      %727 = vdwg.mxu0
      %vm728 = vcmp.ge.f32.partialorder %v474, 0.0
      %vm729 = vcmp.ge.f32.partialorder %v477, 0.0
      %vm730 = vcmp.ge.f32.partialorder %v482, 0.0
      %vm731 = vcmp.ge.f32.partialorder %v485, 0.0
      %vm732 = vcmp.ge.f32.partialorder %v490, 0.0
      %vm733 = vcmp.ge.f32.partialorder %v493, 0.0
      %vm734 = vcmp.ge.f32.partialorder %v498, 0.0
      %vm735 = vcmp.ge.f32.partialorder %v501, 0.0
      %vm736 = vcmp.ge.f32.partialorder %v506, 0.0
      %vm737 = vcmp.ge.f32.partialorder %v509, 0.0
      %vm738 = vcmp.ge.f32.partialorder %v514, 0.0
      %vm739 = vcmp.ge.f32.partialorder %v517, 0.0
      %vm740 = vcmp.ge.f32.partialorder %v522, 0.0
      %vm741 = vcmp.ge.f32.partialorder %v525, 0.0
      %vm742 = vcmp.ge.f32.partialorder %v530, 0.0
      %vm743 = vcmp.ge.f32.partialorder %v533, 0.0
      %vm744 = vcmp.ge.f32.partialorder %v538, 0.0
      %vm745 = vcmp.ge.f32.partialorder %v541, 0.0
      %vm746 = vcmp.ge.f32.partialorder %v546, 0.0
      %vm747 = vcmp.ge.f32.partialorder %v549, 0.0
      %vm748 = vcmp.ge.f32.partialorder %v554, 0.0
      %vm749 = vcmp.ge.f32.partialorder %v557, 0.0
      %vm750 = vcmp.ge.f32.partialorder %v562, 0.0
      %vm751 = vcmp.ge.f32.partialorder %v565, 0.0
      %vm752 = vcmp.ge.f32.partialorder %v570, 0.0
      %vm753 = vcmp.ge.f32.partialorder %v573, 0.0
      %vm754 = vcmp.ge.f32.partialorder %v578, 0.0
      %vm755 = vcmp.ge.f32.partialorder %v581, 0.0
      %vm756 = vcmp.ge.f32.partialorder %v586, 0.0
      %vm757 = vcmp.ge.f32.partialorder %v589, 0.0
      %vm758 = vcmp.ge.f32.partialorder %v594, 0.0
      %vm759 = vcmp.ge.f32.partialorder %v597, 0.0
      %vm760 = vcmp.ge.f32.partialorder %v602, 0.0
      %vm761 = vcmp.ge.f32.partialorder %v605, 0.0
      %vm762 = vcmp.ge.f32.partialorder %v610, 0.0
      %vm763 = vcmp.ge.f32.partialorder %v613, 0.0
      %vm764 = vcmp.ge.f32.partialorder %v618, 0.0
      %vm765 = vcmp.ge.f32.partialorder %v621, 0.0
      %vm766 = vcmp.ge.f32.partialorder %v626, 0.0
      %vm767 = vcmp.ge.f32.partialorder %v629, 0.0
      %vm768 = vcmp.ge.f32.partialorder %v634, 0.0
      %vm769 = vcmp.ge.f32.partialorder %v637, 0.0
      %vm770 = vcmp.ge.f32.partialorder %v642, 0.0
      %vm771 = vcmp.ge.f32.partialorder %v645, 0.0
      %vm772 = vcmp.ge.f32.partialorder %v650, 0.0
      %vm773 = vcmp.ge.f32.partialorder %v653, 0.0
      %vm774 = vcmp.ge.f32.partialorder %v658, 0.0
      %vm775 = vcmp.ge.f32.partialorder %v661, 0.0
      %vm776 = vcmp.ge.f32.partialorder %v666, 0.0
      %vm777 = vcmp.ge.f32.partialorder %v669, 0.0
      %vm778 = vcmp.ge.f32.partialorder %v674, 0.0
      %vm779 = vcmp.ge.f32.partialorder %v677, 0.0
      %vm780 = vcmp.ge.f32.partialorder %v682, 0.0
      %vm781 = vcmp.ge.f32.partialorder %v685, 0.0
      %vm782 = vcmp.ge.f32.partialorder %v690, 0.0
      %vm783 = vcmp.ge.f32.partialorder %v693, 0.0
      %vm784 = vcmp.ge.f32.partialorder %v698, 0.0
      %vm785 = vcmp.ge.f32.partialorder %v701, 0.0
      %vm786 = vcmp.ge.f32.partialorder %v706, 0.0
      %vm787 = vcmp.ge.f32.partialorder %v709, 0.0
      %vm788 = vcmp.ge.f32.partialorder %v714, 0.0
      %vm789 = vcmp.ge.f32.partialorder %v717, 0.0
      %vm790 = vcmp.ge.f32.partialorder %v722, 0.0
      %vm791 = vcmp.ge.f32.partialorder %v725, 0.0
      %s792 = sld [smem:[#allocation3]]
      %v793 = vstv %s792
      %v794 = vmul.f32 %v793, %v474
      %v795 = vmul.f32 %v793, %v477
      %v796 = vmul.f32 %v793, %v482
      %v797 = vmul.f32 %v793, %v485
      %v798 = vmul.f32 %v793, %v490
      %v799 = vmul.f32 %v793, %v493
      %v800 = vmul.f32 %v793, %v498
      %v801 = vmul.f32 %v793, %v501
      %v802 = vmul.f32 %v793, %v506
      %v803 = vmul.f32 %v793, %v509
      %v804 = vmul.f32 %v793, %v514
      %v805 = vmul.f32 %v793, %v517
      %v806 = vmul.f32 %v793, %v522
      %v807 = vmul.f32 %v793, %v525
      %v808 = vmul.f32 %v793, %v530
      %v809 = vmul.f32 %v793, %v533
      %v810 = vmul.f32 %v793, %v538
      %v811 = vmul.f32 %v793, %v541
      %v812 = vmul.f32 %v793, %v546
      %v813 = vmul.f32 %v793, %v549
      %v814 = vmul.f32 %v793, %v554
      %v815 = vmul.f32 %v793, %v557
      %v816 = vmul.f32 %v793, %v562
      %v817 = vmul.f32 %v793, %v565
      %v818 = vmul.f32 %v793, %v570
      %v819 = vmul.f32 %v793, %v573
      %v820 = vmul.f32 %v793, %v578
      %v821 = vmul.f32 %v793, %v581
      %v822 = vmul.f32 %v793, %v586
      %v823 = vmul.f32 %v793, %v589
      %v824 = vmul.f32 %v793, %v594
      %v825 = vmul.f32 %v793, %v597
      %v826 = vmul.f32 %v793, %v602
      %v827 = vmul.f32 %v793, %v605
      %v828 = vmul.f32 %v793, %v610
      %v829 = vmul.f32 %v793, %v613
      %v830 = vmul.f32 %v793, %v618
      %v831 = vmul.f32 %v793, %v621
      %v832 = vmul.f32 %v793, %v626
      %v833 = vmul.f32 %v793, %v629
      %v834 = vmul.f32 %v793, %v634
      %v835 = vmul.f32 %v793, %v637
      %v836 = vmul.f32 %v793, %v642
      %v837 = vmul.f32 %v793, %v645
      %v838 = vmul.f32 %v793, %v650
      %v839 = vmul.f32 %v793, %v653
      %v840 = vmul.f32 %v793, %v658
      %v841 = vmul.f32 %v793, %v661
      %v842 = vmul.f32 %v793, %v666
      %v843 = vmul.f32 %v793, %v669
      %v844 = vmul.f32 %v793, %v674
      %v845 = vmul.f32 %v793, %v677
      %v846 = vmul.f32 %v793, %v682
      %v847 = vmul.f32 %v793, %v685
      %v848 = vmul.f32 %v793, %v690
      %v849 = vmul.f32 %v793, %v693
      %v850 = vmul.f32 %v793, %v698
      %v851 = vmul.f32 %v793, %v701
      %v852 = vmul.f32 %v793, %v706
      %v853 = vmul.f32 %v793, %v709
      %v854 = vmul.f32 %v793, %v714
      %v855 = vmul.f32 %v793, %v717
      %v856 = vmul.f32 %v793, %v722
      %v857 = vmul.f32 %v793, %v725
      %v858 = vsel %vm728, %v474, %v794
      %v859 = vsel %vm729, %v477, %v795
      %v860 = vsel %vm730, %v482, %v796
      %v861 = vsel %vm731, %v485, %v797
      %v862 = vsel %vm732, %v490, %v798
      %v863 = vsel %vm733, %v493, %v799
      %v864 = vsel %vm734, %v498, %v800
      %v865 = vsel %vm735, %v501, %v801
      %v866 = vsel %vm736, %v506, %v802
      %v867 = vsel %vm737, %v509, %v803
      %v868 = vsel %vm738, %v514, %v804
      %v869 = vsel %vm739, %v517, %v805
      %v870 = vsel %vm740, %v522, %v806
      %v871 = vsel %vm741, %v525, %v807
      %v872 = vsel %vm742, %v530, %v808
      %v873 = vsel %vm743, %v533, %v809
      %v874 = vsel %vm744, %v538, %v810
      %v875 = vsel %vm745, %v541, %v811
      %v876 = vsel %vm746, %v546, %v812
      %v877 = vsel %vm747, %v549, %v813
      %v878 = vsel %vm748, %v554, %v814
      %v879 = vsel %vm749, %v557, %v815
      %v880 = vsel %vm750, %v562, %v816
      %v881 = vsel %vm751, %v565, %v817
      %v882 = vsel %vm752, %v570, %v818
      %v883 = vsel %vm753, %v573, %v819
      %v884 = vsel %vm754, %v578, %v820
      %v885 = vsel %vm755, %v581, %v821
      %v886 = vsel %vm756, %v586, %v822
      %v887 = vsel %vm757, %v589, %v823
      %v888 = vsel %vm758, %v594, %v824
      %v889 = vsel %vm759, %v597, %v825
      %v890 = vsel %vm760, %v602, %v826
      %v891 = vsel %vm761, %v605, %v827
      %v892 = vsel %vm762, %v610, %v828
      %v893 = vsel %vm763, %v613, %v829
      %v894 = vsel %vm764, %v618, %v830
      %v895 = vsel %vm765, %v621, %v831
      %v896 = vsel %vm766, %v626, %v832
      %v897 = vsel %vm767, %v629, %v833
      %v898 = vsel %vm768, %v634, %v834
      %v899 = vsel %vm769, %v637, %v835
      %v900 = vsel %vm770, %v642, %v836
      %v901 = vsel %vm771, %v645, %v837
      %v902 = vsel %vm772, %v650, %v838
      %v903 = vsel %vm773, %v653, %v839
      %v904 = vsel %vm774, %v658, %v840
      %v905 = vsel %vm775, %v661, %v841
      %v906 = vsel %vm776, %v666, %v842
      %v907 = vsel %vm777, %v669, %v843
      %v908 = vsel %vm778, %v674, %v844
      %v909 = vsel %vm779, %v677, %v845
      %v910 = vsel %vm780, %v682, %v846
      %v911 = vsel %vm781, %v685, %v847
      %v912 = vsel %vm782, %v690, %v848
      %v913 = vsel %vm783, %v693, %v849
      %v914 = vsel %vm784, %v698, %v850
      %v915 = vsel %vm785, %v701, %v851
      %v916 = vsel %vm786, %v706, %v852
      %v917 = vsel %vm787, %v709, %v853
      %v918 = vsel %vm788, %v714, %v854
      %v919 = vsel %vm789, %v717, %v855
      %v920 = vsel %vm790, %v722, %v856
      %v921 = vsel %vm791, %v725, %v857
      %v922 = vpack.c.bf16 %v859, %v858
      %v923 = vpack.c.bf16 %v861, %v860
      %v924 = vpack.c.bf16 %v863, %v862
      %v925 = vpack.c.bf16 %v865, %v864
      %v926 = vpack.c.bf16 %v867, %v866
      %v927 = vpack.c.bf16 %v869, %v868
      %v928 = vpack.c.bf16 %v871, %v870
      %v929 = vpack.c.bf16 %v873, %v872
      %v930 = vpack.c.bf16 %v875, %v874
      %v931 = vpack.c.bf16 %v877, %v876
      %v932 = vpack.c.bf16 %v879, %v878
      %v933 = vpack.c.bf16 %v881, %v880
      %v934 = vpack.c.bf16 %v883, %v882
      %v935 = vpack.c.bf16 %v885, %v884
      %v936 = vpack.c.bf16 %v887, %v886
      %v937 = vpack.c.bf16 %v889, %v888
      %v938 = vpack.c.bf16 %v891, %v890
      %v939 = vpack.c.bf16 %v893, %v892
      %v940 = vpack.c.bf16 %v895, %v894
      %v941 = vpack.c.bf16 %v897, %v896
      %v942 = vpack.c.bf16 %v899, %v898
      %v943 = vpack.c.bf16 %v901, %v900
      %v944 = vpack.c.bf16 %v903, %v902
      %v945 = vpack.c.bf16 %v905, %v904
      %v946 = vpack.c.bf16 %v907, %v906
      %v947 = vpack.c.bf16 %v909, %v908
      %v948 = vpack.c.bf16 %v911, %v910
      %v949 = vpack.c.bf16 %v913, %v912
      %v950 = vpack.c.bf16 %v915, %v914
      %v951 = vpack.c.bf16 %v917, %v916
      %v952 = vpack.c.bf16 %v919, %v918
      %v953 = vpack.c.bf16 %v921, %v920
      %v954 = vld [vmem:[%s3] sm:$0xf]
      %v955 = vld [vmem:[%s3 + $0x4] sm:$0xf]
      %v956 = vld [vmem:[%s3 + $0x8] sm:$0xf]
      %v957 = vld [vmem:[%s3 + $0xc] sm:$0xf]
      %v958 = vld [vmem:[%s3 + $0x10] sm:$0xf]
      %v959 = vld [vmem:[%s3 + $0x14] sm:$0xf]
      %v960 = vld [vmem:[%s3 + $0x18] sm:$0xf]
      %v961 = vld [vmem:[%s3 + $0x1c] sm:$0xf]
      %v962 = vld [vmem:[%s3 + $0x20] sm:$0xf]
      %v963 = vld [vmem:[%s3 + $0x24] sm:$0xf]
      %v964 = vld [vmem:[%s3 + $0x28] sm:$0xf]
      %v965 = vld [vmem:[%s3 + $0x2c] sm:$0xf]
      %v966 = vld [vmem:[%s3 + $0x30] sm:$0xf]
      %v967 = vld [vmem:[%s3 + $0x34] sm:$0xf]
      %v968 = vld [vmem:[%s3 + $0x38] sm:$0xf]
      %v969 = vld [vmem:[%s3 + $0x3c] sm:$0xf]
      %v970 = vld [vmem:[%s5 + $0x1] sm:$0x1]
      %v971 = vlaneseq
      %v972 = vshrl.u32 %v971, 7
      %v973 = vsub.s32 0, %v972
      %v974 = vrot.slane %v970, %v973
      %v991 = vunpack.c.l.b16 %v954
      %v992 = vunpack.c.l.b16 %v955
      %v993 = vunpack.c.l.b16 %v956
      %v994 = vunpack.c.l.b16 %v957
      %v995 = vunpack.c.l.b16 %v958
      %v996 = vunpack.c.l.b16 %v959
      %v997 = vunpack.c.l.b16 %v960
      %v998 = vunpack.c.l.b16 %v961
      %v999 = vunpack.c.l.b16 %v962
      %v1000 = vunpack.c.l.b16 %v963
      %v1001 = vunpack.c.l.b16 %v964
      %v1002 = vunpack.c.l.b16 %v965
      %v1003 = vunpack.c.l.b16 %v966
      %v1004 = vunpack.c.l.b16 %v967
      %v1005 = vunpack.c.l.b16 %v968
      %v1006 = vunpack.c.l.b16 %v969
      %v1007 = vpack.c.b16 %v992, %v991
      %v1008 = vpack.c.b16 %v994, %v993
      %v1009 = vpack.c.b16 %v996, %v995
      %v1010 = vpack.c.b16 %v998, %v997
      %v1011 = vpack.c.b16 %v1000, %v999
      %v1012 = vpack.c.b16 %v1002, %v1001
      %v1013 = vpack.c.b16 %v1004, %v1003
      %v1014 = vpack.c.b16 %v1006, %v1005
      %1023 = vmatprep.subr.bf16.mxu0 0
      %1024 = vmatpush1.bf16.msra.mxu0 %v1014
      %1025 = vmatprep.subr.bf16.mxu0 0
      %1026 = vmatpush1.bf16.msra.mxu0 %v1013
      %1027 = vmatprep.subr.bf16.mxu0 0
      %1028 = vmatpush1.bf16.msra.mxu0 %v1012
      %1029 = vmatprep.subr.bf16.mxu0 0
      %1030 = vmatpush1.bf16.msra.mxu0 %v1011
      %1031 = vmatprep.subr.bf16.mxu0 0
      %1032 = vmatpush1.bf16.msra.mxu0 %v1010
      %1033 = vmatprep.subr.bf16.mxu0 0
      %1034 = vmatpush1.bf16.msra.mxu0 %v1009
      %1035 = vmatprep.subr.bf16.mxu0 0
      %1036 = vmatpush1.bf16.msra.mxu0 %v1008
      %1037 = vmatprep.subr.bf16.mxu0 0
      %1038 = vmatpush1.bf16.msra.mxu0 %v1007
      %1039 = vmatprep.subr.bf16.mxu0 0
      %1040 = vmatpush2.bf16.msra.mxu0 0
      %1041 = vmatprep.subr.bf16.mxu0 0
      %1042 = vmatpush2.bf16.msra.mxu0 0
      %1043 = vmatprep.subr.bf16.mxu0 0
      %1044 = vmatpush2.bf16.msra.mxu0 0
      %1045 = vmatprep.subr.bf16.mxu0 0
      %1046 = vmatpush2.bf16.msra.mxu0 0
      %1047 = vmatprep.subr.bf16.mxu0 0
      %1048 = vmatpush2.bf16.msra.mxu0 0
      %1049 = vmatprep.subr.bf16.mxu0 0
      %1050 = vmatpush2.bf16.msra.mxu0 0
      %1051 = vmatprep.subr.bf16.mxu0 0
      %1052 = vmatpush2.bf16.msra.mxu0 0
      %1053 = vmatprep.subr.bf16.mxu0 0
      %1054 = vmatpush2.bf16.msra.mxu0 0
      %1055 = vmatprep.mubr.bf16.mxu0 0
      %1056 = vmatmul.mubr.bf16.gmra.mxu0 %v922
      %v1057 = vpop.f32.mrf.mxu0
      %v1058 = vadd.f32 %v974, %v1057
      %v1059 = vpop.f32.mrf.mxu0
      %v1060 = vpop.f32.mrf.mxu0
      %v1061 = vadd.f32 %v974, %v1060
      %v1062 = vpop.f32.mrf.mxu0
      %1063 = vmatprep.mubr.bf16.mxu0 0
      %1064 = vmatmul.mubr.bf16.gmra.mxu0 %v923
      %v1065 = vpop.f32.mrf.mxu0
      %v1066 = vadd.f32 %v974, %v1065
      %v1067 = vpop.f32.mrf.mxu0
      %v1068 = vpop.f32.mrf.mxu0
      %v1069 = vadd.f32 %v974, %v1068
      %v1070 = vpop.f32.mrf.mxu0
      %1071 = vmatprep.mubr.bf16.mxu0 0
      %1072 = vmatmul.mubr.bf16.gmra.mxu0 %v924
      %v1073 = vpop.f32.mrf.mxu0
      %v1074 = vadd.f32 %v974, %v1073
      %v1075 = vpop.f32.mrf.mxu0
      %v1076 = vpop.f32.mrf.mxu0
      %v1077 = vadd.f32 %v974, %v1076
      %v1078 = vpop.f32.mrf.mxu0
      %1079 = vmatprep.mubr.bf16.mxu0 0
      %1080 = vmatmul.mubr.bf16.gmra.mxu0 %v925
      %v1081 = vpop.f32.mrf.mxu0
      %v1082 = vadd.f32 %v974, %v1081
      %v1083 = vpop.f32.mrf.mxu0
      %v1084 = vpop.f32.mrf.mxu0
      %v1085 = vadd.f32 %v974, %v1084
      %v1086 = vpop.f32.mrf.mxu0
      %1087 = vmatprep.mubr.bf16.mxu0 0
      %1088 = vmatmul.mubr.bf16.gmra.mxu0 %v926
      %v1089 = vpop.f32.mrf.mxu0
      %v1090 = vadd.f32 %v974, %v1089
      %v1091 = vpop.f32.mrf.mxu0
      %v1092 = vpop.f32.mrf.mxu0
      %v1093 = vadd.f32 %v974, %v1092
      %v1094 = vpop.f32.mrf.mxu0
      %1095 = vmatprep.mubr.bf16.mxu0 0
      %1096 = vmatmul.mubr.bf16.gmra.mxu0 %v927
      %v1097 = vpop.f32.mrf.mxu0
      %v1098 = vadd.f32 %v974, %v1097
      %v1099 = vpop.f32.mrf.mxu0
      %v1100 = vpop.f32.mrf.mxu0
      %v1101 = vadd.f32 %v974, %v1100
      %v1102 = vpop.f32.mrf.mxu0
      %1103 = vmatprep.mubr.bf16.mxu0 0
      %1104 = vmatmul.mubr.bf16.gmra.mxu0 %v928
      %v1105 = vpop.f32.mrf.mxu0
      %v1106 = vadd.f32 %v974, %v1105
      %v1107 = vpop.f32.mrf.mxu0
      %v1108 = vpop.f32.mrf.mxu0
      %v1109 = vadd.f32 %v974, %v1108
      %v1110 = vpop.f32.mrf.mxu0
      %1111 = vmatprep.mubr.bf16.mxu0 0
      %1112 = vmatmul.mubr.bf16.gmra.mxu0 %v929
      %v1113 = vpop.f32.mrf.mxu0
      %v1114 = vadd.f32 %v974, %v1113
      %v1115 = vpop.f32.mrf.mxu0
      %v1116 = vpop.f32.mrf.mxu0
      %v1117 = vadd.f32 %v974, %v1116
      %v1118 = vpop.f32.mrf.mxu0
      %1119 = vmatprep.mubr.bf16.mxu0 0
      %1120 = vmatmul.mubr.bf16.gmra.mxu0 %v930
      %v1121 = vpop.f32.mrf.mxu0
      %v1122 = vadd.f32 %v974, %v1121
      %v1123 = vpop.f32.mrf.mxu0
      %v1124 = vpop.f32.mrf.mxu0
      %v1125 = vadd.f32 %v974, %v1124
      %v1126 = vpop.f32.mrf.mxu0
      %1127 = vmatprep.mubr.bf16.mxu0 0
      %1128 = vmatmul.mubr.bf16.gmra.mxu0 %v931
      %v1129 = vpop.f32.mrf.mxu0
      %v1130 = vadd.f32 %v974, %v1129
      %v1131 = vpop.f32.mrf.mxu0
      %v1132 = vpop.f32.mrf.mxu0
      %v1133 = vadd.f32 %v974, %v1132
      %v1134 = vpop.f32.mrf.mxu0
      %1135 = vmatprep.mubr.bf16.mxu0 0
      %1136 = vmatmul.mubr.bf16.gmra.mxu0 %v932
      %v1137 = vpop.f32.mrf.mxu0
      %v1138 = vadd.f32 %v974, %v1137
      %v1139 = vpop.f32.mrf.mxu0
      %v1140 = vpop.f32.mrf.mxu0
      %v1141 = vadd.f32 %v974, %v1140
      %v1142 = vpop.f32.mrf.mxu0
      %1143 = vmatprep.mubr.bf16.mxu0 0
      %1144 = vmatmul.mubr.bf16.gmra.mxu0 %v933
      %v1145 = vpop.f32.mrf.mxu0
      %v1146 = vadd.f32 %v974, %v1145
      %v1147 = vpop.f32.mrf.mxu0
      %v1148 = vpop.f32.mrf.mxu0
      %v1149 = vadd.f32 %v974, %v1148
      %v1150 = vpop.f32.mrf.mxu0
      %1151 = vmatprep.mubr.bf16.mxu0 0
      %1152 = vmatmul.mubr.bf16.gmra.mxu0 %v934
      %v1153 = vpop.f32.mrf.mxu0
      %v1154 = vadd.f32 %v974, %v1153
      %v1155 = vpop.f32.mrf.mxu0
      %v1156 = vpop.f32.mrf.mxu0
      %v1157 = vadd.f32 %v974, %v1156
      %v1158 = vpop.f32.mrf.mxu0
      %1159 = vmatprep.mubr.bf16.mxu0 0
      %1160 = vmatmul.mubr.bf16.gmra.mxu0 %v935
      %v1161 = vpop.f32.mrf.mxu0
      %v1162 = vadd.f32 %v974, %v1161
      %v1163 = vpop.f32.mrf.mxu0
      %v1164 = vpop.f32.mrf.mxu0
      %v1165 = vadd.f32 %v974, %v1164
      %v1166 = vpop.f32.mrf.mxu0
      %1167 = vmatprep.mubr.bf16.mxu0 0
      %1168 = vmatmul.mubr.bf16.gmra.mxu0 %v936
      %v1169 = vpop.f32.mrf.mxu0
      %v1170 = vadd.f32 %v974, %v1169
      %v1171 = vpop.f32.mrf.mxu0
      %v1172 = vpop.f32.mrf.mxu0
      %v1173 = vadd.f32 %v974, %v1172
      %v1174 = vpop.f32.mrf.mxu0
      %1175 = vmatprep.mubr.bf16.mxu0 0
      %1176 = vmatmul.mubr.bf16.gmra.mxu0 %v937
      %v1177 = vpop.f32.mrf.mxu0
      %v1178 = vadd.f32 %v974, %v1177
      %v1179 = vpop.f32.mrf.mxu0
      %v1180 = vpop.f32.mrf.mxu0
      %v1181 = vadd.f32 %v974, %v1180
      %v1182 = vpop.f32.mrf.mxu0
      %1183 = vmatprep.mubr.bf16.mxu0 0
      %1184 = vmatmul.mubr.bf16.gmra.mxu0 %v938
      %v1185 = vpop.f32.mrf.mxu0
      %v1186 = vadd.f32 %v974, %v1185
      %v1187 = vpop.f32.mrf.mxu0
      %v1188 = vpop.f32.mrf.mxu0
      %v1189 = vadd.f32 %v974, %v1188
      %v1190 = vpop.f32.mrf.mxu0
      %1191 = vmatprep.mubr.bf16.mxu0 0
      %1192 = vmatmul.mubr.bf16.gmra.mxu0 %v939
      %v1193 = vpop.f32.mrf.mxu0
      %v1194 = vadd.f32 %v974, %v1193
      %v1195 = vpop.f32.mrf.mxu0
      %v1196 = vpop.f32.mrf.mxu0
      %v1197 = vadd.f32 %v974, %v1196
      %v1198 = vpop.f32.mrf.mxu0
      %1199 = vmatprep.mubr.bf16.mxu0 0
      %1200 = vmatmul.mubr.bf16.gmra.mxu0 %v940
      %v1201 = vpop.f32.mrf.mxu0
      %v1202 = vadd.f32 %v974, %v1201
      %v1203 = vpop.f32.mrf.mxu0
      %v1204 = vpop.f32.mrf.mxu0
      %v1205 = vadd.f32 %v974, %v1204
      %v1206 = vpop.f32.mrf.mxu0
      %1207 = vmatprep.mubr.bf16.mxu0 0
      %1208 = vmatmul.mubr.bf16.gmra.mxu0 %v941
      %v1209 = vpop.f32.mrf.mxu0
      %v1210 = vadd.f32 %v974, %v1209
      %v1211 = vpop.f32.mrf.mxu0
      %v1212 = vpop.f32.mrf.mxu0
      %v1213 = vadd.f32 %v974, %v1212
      %v1214 = vpop.f32.mrf.mxu0
      %1215 = vmatprep.mubr.bf16.mxu0 0
      %1216 = vmatmul.mubr.bf16.gmra.mxu0 %v942
      %v1217 = vpop.f32.mrf.mxu0
      %v1218 = vadd.f32 %v974, %v1217
      %v1219 = vpop.f32.mrf.mxu0
      %v1220 = vpop.f32.mrf.mxu0
      %v1221 = vadd.f32 %v974, %v1220
      %v1222 = vpop.f32.mrf.mxu0
      %1223 = vmatprep.mubr.bf16.mxu0 0
      %1224 = vmatmul.mubr.bf16.gmra.mxu0 %v943
      %v1225 = vpop.f32.mrf.mxu0
      %v1226 = vadd.f32 %v974, %v1225
      %v1227 = vpop.f32.mrf.mxu0
      %v1228 = vpop.f32.mrf.mxu0
      %v1229 = vadd.f32 %v974, %v1228
      %v1230 = vpop.f32.mrf.mxu0
      %1231 = vmatprep.mubr.bf16.mxu0 0
      %1232 = vmatmul.mubr.bf16.gmra.mxu0 %v944
      %v1233 = vpop.f32.mrf.mxu0
      %v1234 = vadd.f32 %v974, %v1233
      %v1235 = vpop.f32.mrf.mxu0
      %v1236 = vpop.f32.mrf.mxu0
      %v1237 = vadd.f32 %v974, %v1236
      %v1238 = vpop.f32.mrf.mxu0
      %1239 = vmatprep.mubr.bf16.mxu0 0
      %1240 = vmatmul.mubr.bf16.gmra.mxu0 %v945
      %v1241 = vpop.f32.mrf.mxu0
      %v1242 = vadd.f32 %v974, %v1241
      %v1243 = vpop.f32.mrf.mxu0
      %v1244 = vpop.f32.mrf.mxu0
      %v1245 = vadd.f32 %v974, %v1244
      %v1246 = vpop.f32.mrf.mxu0
      %1247 = vmatprep.mubr.bf16.mxu0 0
      %1248 = vmatmul.mubr.bf16.gmra.mxu0 %v946
      %v1249 = vpop.f32.mrf.mxu0
      %v1250 = vadd.f32 %v974, %v1249
      %v1251 = vpop.f32.mrf.mxu0
      %v1252 = vpop.f32.mrf.mxu0
      %v1253 = vadd.f32 %v974, %v1252
      %v1254 = vpop.f32.mrf.mxu0
      %1255 = vmatprep.mubr.bf16.mxu0 0
      %1256 = vmatmul.mubr.bf16.gmra.mxu0 %v947
      %v1257 = vpop.f32.mrf.mxu0
      %v1258 = vadd.f32 %v974, %v1257
      %v1259 = vpop.f32.mrf.mxu0
      %v1260 = vpop.f32.mrf.mxu0
      %v1261 = vadd.f32 %v974, %v1260
      %v1262 = vpop.f32.mrf.mxu0
      %1263 = vmatprep.mubr.bf16.mxu0 0
      %1264 = vmatmul.mubr.bf16.gmra.mxu0 %v948
      %v1265 = vpop.f32.mrf.mxu0
      %v1266 = vadd.f32 %v974, %v1265
      %v1267 = vpop.f32.mrf.mxu0
      %v1268 = vpop.f32.mrf.mxu0
      %v1269 = vadd.f32 %v974, %v1268
      %v1270 = vpop.f32.mrf.mxu0
      %1271 = vmatprep.mubr.bf16.mxu0 0
      %1272 = vmatmul.mubr.bf16.gmra.mxu0 %v949
      %v1273 = vpop.f32.mrf.mxu0
      %v1274 = vadd.f32 %v974, %v1273
      %v1275 = vpop.f32.mrf.mxu0
      %v1276 = vpop.f32.mrf.mxu0
      %v1277 = vadd.f32 %v974, %v1276
      %v1278 = vpop.f32.mrf.mxu0
      %1279 = vmatprep.mubr.bf16.mxu0 0
      %1280 = vmatmul.mubr.bf16.gmra.mxu0 %v950
      %v1281 = vpop.f32.mrf.mxu0
      %v1282 = vadd.f32 %v974, %v1281
      %v1283 = vpop.f32.mrf.mxu0
      %v1284 = vpop.f32.mrf.mxu0
      %v1285 = vadd.f32 %v974, %v1284
      %v1286 = vpop.f32.mrf.mxu0
      %1287 = vmatprep.mubr.bf16.mxu0 0
      %1288 = vmatmul.mubr.bf16.gmra.mxu0 %v951
      %v1289 = vpop.f32.mrf.mxu0
      %v1290 = vadd.f32 %v974, %v1289
      %v1291 = vpop.f32.mrf.mxu0
      %v1292 = vpop.f32.mrf.mxu0
      %v1293 = vadd.f32 %v974, %v1292
      %v1294 = vpop.f32.mrf.mxu0
      %1295 = vmatprep.mubr.bf16.mxu0 0
      %1296 = vmatmul.mubr.bf16.gmra.mxu0 %v952
      %v1297 = vpop.f32.mrf.mxu0
      %v1298 = vadd.f32 %v974, %v1297
      %v1299 = vpop.f32.mrf.mxu0
      %v1300 = vpop.f32.mrf.mxu0
      %v1301 = vadd.f32 %v974, %v1300
      %v1302 = vpop.f32.mrf.mxu0
      %1303 = vmatprep.mubr.bf16.mxu0 0
      %1304 = vmatmul.mubr.bf16.gmra.mxu0 %v953
      %v1305 = vpop.f32.mrf.mxu0
      %v1306 = vadd.f32 %v974, %v1305
      %v1307 = vpop.f32.mrf.mxu0
      %v1308 = vpop.f32.mrf.mxu0
      %v1309 = vadd.f32 %v974, %v1308
      %v1310 = vpop.f32.mrf.mxu0
      %1311 = vdwg.mxu0
      %vm1312 = vcmp.ge.f32.partialorder %v1058, 0.0
      %vm1313 = vcmp.ge.f32.partialorder %v1061, 0.0
      %vm1314 = vcmp.ge.f32.partialorder %v1066, 0.0
      %vm1315 = vcmp.ge.f32.partialorder %v1069, 0.0
      %vm1316 = vcmp.ge.f32.partialorder %v1074, 0.0
      %vm1317 = vcmp.ge.f32.partialorder %v1077, 0.0
      %vm1318 = vcmp.ge.f32.partialorder %v1082, 0.0
      %vm1319 = vcmp.ge.f32.partialorder %v1085, 0.0
      %vm1320 = vcmp.ge.f32.partialorder %v1090, 0.0
      %vm1321 = vcmp.ge.f32.partialorder %v1093, 0.0
      %vm1322 = vcmp.ge.f32.partialorder %v1098, 0.0
      %vm1323 = vcmp.ge.f32.partialorder %v1101, 0.0
      %vm1324 = vcmp.ge.f32.partialorder %v1106, 0.0
      %vm1325 = vcmp.ge.f32.partialorder %v1109, 0.0
      %vm1326 = vcmp.ge.f32.partialorder %v1114, 0.0
      %vm1327 = vcmp.ge.f32.partialorder %v1117, 0.0
      %vm1328 = vcmp.ge.f32.partialorder %v1122, 0.0
      %vm1329 = vcmp.ge.f32.partialorder %v1125, 0.0
      %vm1330 = vcmp.ge.f32.partialorder %v1130, 0.0
      %vm1331 = vcmp.ge.f32.partialorder %v1133, 0.0
      %vm1332 = vcmp.ge.f32.partialorder %v1138, 0.0
      %vm1333 = vcmp.ge.f32.partialorder %v1141, 0.0
      %vm1334 = vcmp.ge.f32.partialorder %v1146, 0.0
      %vm1335 = vcmp.ge.f32.partialorder %v1149, 0.0
      %vm1336 = vcmp.ge.f32.partialorder %v1154, 0.0
      %vm1337 = vcmp.ge.f32.partialorder %v1157, 0.0
      %vm1338 = vcmp.ge.f32.partialorder %v1162, 0.0
      %vm1339 = vcmp.ge.f32.partialorder %v1165, 0.0
      %vm1340 = vcmp.ge.f32.partialorder %v1170, 0.0
      %vm1341 = vcmp.ge.f32.partialorder %v1173, 0.0
      %vm1342 = vcmp.ge.f32.partialorder %v1178, 0.0
      %vm1343 = vcmp.ge.f32.partialorder %v1181, 0.0
      %vm1344 = vcmp.ge.f32.partialorder %v1186, 0.0
      %vm1345 = vcmp.ge.f32.partialorder %v1189, 0.0
      %vm1346 = vcmp.ge.f32.partialorder %v1194, 0.0
      %vm1347 = vcmp.ge.f32.partialorder %v1197, 0.0
      %vm1348 = vcmp.ge.f32.partialorder %v1202, 0.0
      %vm1349 = vcmp.ge.f32.partialorder %v1205, 0.0
      %vm1350 = vcmp.ge.f32.partialorder %v1210, 0.0
      %vm1351 = vcmp.ge.f32.partialorder %v1213, 0.0
      %vm1352 = vcmp.ge.f32.partialorder %v1218, 0.0
      %vm1353 = vcmp.ge.f32.partialorder %v1221, 0.0
      %vm1354 = vcmp.ge.f32.partialorder %v1226, 0.0
      %vm1355 = vcmp.ge.f32.partialorder %v1229, 0.0
      %vm1356 = vcmp.ge.f32.partialorder %v1234, 0.0
      %vm1357 = vcmp.ge.f32.partialorder %v1237, 0.0
      %vm1358 = vcmp.ge.f32.partialorder %v1242, 0.0
      %vm1359 = vcmp.ge.f32.partialorder %v1245, 0.0
      %vm1360 = vcmp.ge.f32.partialorder %v1250, 0.0
      %vm1361 = vcmp.ge.f32.partialorder %v1253, 0.0
      %vm1362 = vcmp.ge.f32.partialorder %v1258, 0.0
      %vm1363 = vcmp.ge.f32.partialorder %v1261, 0.0
      %vm1364 = vcmp.ge.f32.partialorder %v1266, 0.0
      %vm1365 = vcmp.ge.f32.partialorder %v1269, 0.0
      %vm1366 = vcmp.ge.f32.partialorder %v1274, 0.0
      %vm1367 = vcmp.ge.f32.partialorder %v1277, 0.0
      %vm1368 = vcmp.ge.f32.partialorder %v1282, 0.0
      %vm1369 = vcmp.ge.f32.partialorder %v1285, 0.0
      %vm1370 = vcmp.ge.f32.partialorder %v1290, 0.0
      %vm1371 = vcmp.ge.f32.partialorder %v1293, 0.0
      %vm1372 = vcmp.ge.f32.partialorder %v1298, 0.0
      %vm1373 = vcmp.ge.f32.partialorder %v1301, 0.0
      %vm1374 = vcmp.ge.f32.partialorder %v1306, 0.0
      %vm1375 = vcmp.ge.f32.partialorder %v1309, 0.0
      %s1376 = sld [smem:[#allocation3 + $0x1]]
      %v1377 = vstv %s1376
      %v1378 = vmul.f32 %v1377, %v1058
      %v1379 = vmul.f32 %v1377, %v1061
      %v1380 = vmul.f32 %v1377, %v1066
      %v1381 = vmul.f32 %v1377, %v1069
      %v1382 = vmul.f32 %v1377, %v1074
      %v1383 = vmul.f32 %v1377, %v1077
      %v1384 = vmul.f32 %v1377, %v1082
      %v1385 = vmul.f32 %v1377, %v1085
      %v1386 = vmul.f32 %v1377, %v1090
      %v1387 = vmul.f32 %v1377, %v1093
      %v1388 = vmul.f32 %v1377, %v1098
      %v1389 = vmul.f32 %v1377, %v1101
      %v1390 = vmul.f32 %v1377, %v1106
      %v1391 = vmul.f32 %v1377, %v1109
      %v1392 = vmul.f32 %v1377, %v1114
      %v1393 = vmul.f32 %v1377, %v1117
      %v1394 = vmul.f32 %v1377, %v1122
      %v1395 = vmul.f32 %v1377, %v1125
      %v1396 = vmul.f32 %v1377, %v1130
      %v1397 = vmul.f32 %v1377, %v1133
      %v1398 = vmul.f32 %v1377, %v1138
      %v1399 = vmul.f32 %v1377, %v1141
      %v1400 = vmul.f32 %v1377, %v1146
      %v1401 = vmul.f32 %v1377, %v1149
      %v1402 = vmul.f32 %v1377, %v1154
      %v1403 = vmul.f32 %v1377, %v1157
      %v1404 = vmul.f32 %v1377, %v1162
      %v1405 = vmul.f32 %v1377, %v1165
      %v1406 = vmul.f32 %v1377, %v1170
      %v1407 = vmul.f32 %v1377, %v1173
      %v1408 = vmul.f32 %v1377, %v1178
      %v1409 = vmul.f32 %v1377, %v1181
      %v1410 = vmul.f32 %v1377, %v1186
      %v1411 = vmul.f32 %v1377, %v1189
      %v1412 = vmul.f32 %v1377, %v1194
      %v1413 = vmul.f32 %v1377, %v1197
      %v1414 = vmul.f32 %v1377, %v1202
      %v1415 = vmul.f32 %v1377, %v1205
      %v1416 = vmul.f32 %v1377, %v1210
      %v1417 = vmul.f32 %v1377, %v1213
      %v1418 = vmul.f32 %v1377, %v1218
      %v1419 = vmul.f32 %v1377, %v1221
      %v1420 = vmul.f32 %v1377, %v1226
      %v1421 = vmul.f32 %v1377, %v1229
      %v1422 = vmul.f32 %v1377, %v1234
      %v1423 = vmul.f32 %v1377, %v1237
      %v1424 = vmul.f32 %v1377, %v1242
      %v1425 = vmul.f32 %v1377, %v1245
      %v1426 = vmul.f32 %v1377, %v1250
      %v1427 = vmul.f32 %v1377, %v1253
      %v1428 = vmul.f32 %v1377, %v1258
      %v1429 = vmul.f32 %v1377, %v1261
      %v1430 = vmul.f32 %v1377, %v1266
      %v1431 = vmul.f32 %v1377, %v1269
      %v1432 = vmul.f32 %v1377, %v1274
      %v1433 = vmul.f32 %v1377, %v1277
      %v1434 = vmul.f32 %v1377, %v1282
      %v1435 = vmul.f32 %v1377, %v1285
      %v1436 = vmul.f32 %v1377, %v1290
      %v1437 = vmul.f32 %v1377, %v1293
      %v1438 = vmul.f32 %v1377, %v1298
      %v1439 = vmul.f32 %v1377, %v1301
      %v1440 = vmul.f32 %v1377, %v1306
      %v1441 = vmul.f32 %v1377, %v1309
      %v1442 = vsel %vm1312, %v1058, %v1378
      %v1443 = vsel %vm1313, %v1061, %v1379
      %v1444 = vsel %vm1314, %v1066, %v1380
      %v1445 = vsel %vm1315, %v1069, %v1381
      %v1446 = vsel %vm1316, %v1074, %v1382
      %v1447 = vsel %vm1317, %v1077, %v1383
      %v1448 = vsel %vm1318, %v1082, %v1384
      %v1449 = vsel %vm1319, %v1085, %v1385
      %v1450 = vsel %vm1320, %v1090, %v1386
      %v1451 = vsel %vm1321, %v1093, %v1387
      %v1452 = vsel %vm1322, %v1098, %v1388
      %v1453 = vsel %vm1323, %v1101, %v1389
      %v1454 = vsel %vm1324, %v1106, %v1390
      %v1455 = vsel %vm1325, %v1109, %v1391
      %v1456 = vsel %vm1326, %v1114, %v1392
      %v1457 = vsel %vm1327, %v1117, %v1393
      %v1458 = vsel %vm1328, %v1122, %v1394
      %v1459 = vsel %vm1329, %v1125, %v1395
      %v1460 = vsel %vm1330, %v1130, %v1396
      %v1461 = vsel %vm1331, %v1133, %v1397
      %v1462 = vsel %vm1332, %v1138, %v1398
      %v1463 = vsel %vm1333, %v1141, %v1399
      %v1464 = vsel %vm1334, %v1146, %v1400
      %v1465 = vsel %vm1335, %v1149, %v1401
      %v1466 = vsel %vm1336, %v1154, %v1402
      %v1467 = vsel %vm1337, %v1157, %v1403
      %v1468 = vsel %vm1338, %v1162, %v1404
      %v1469 = vsel %vm1339, %v1165, %v1405
      %v1470 = vsel %vm1340, %v1170, %v1406
      %v1471 = vsel %vm1341, %v1173, %v1407
      %v1472 = vsel %vm1342, %v1178, %v1408
      %v1473 = vsel %vm1343, %v1181, %v1409
      %v1474 = vsel %vm1344, %v1186, %v1410
      %v1475 = vsel %vm1345, %v1189, %v1411
      %v1476 = vsel %vm1346, %v1194, %v1412
      %v1477 = vsel %vm1347, %v1197, %v1413
      %v1478 = vsel %vm1348, %v1202, %v1414
      %v1479 = vsel %vm1349, %v1205, %v1415
      %v1480 = vsel %vm1350, %v1210, %v1416
      %v1481 = vsel %vm1351, %v1213, %v1417
      %v1482 = vsel %vm1352, %v1218, %v1418
      %v1483 = vsel %vm1353, %v1221, %v1419
      %v1484 = vsel %vm1354, %v1226, %v1420
      %v1485 = vsel %vm1355, %v1229, %v1421
      %v1486 = vsel %vm1356, %v1234, %v1422
      %v1487 = vsel %vm1357, %v1237, %v1423
      %v1488 = vsel %vm1358, %v1242, %v1424
      %v1489 = vsel %vm1359, %v1245, %v1425
      %v1490 = vsel %vm1360, %v1250, %v1426
      %v1491 = vsel %vm1361, %v1253, %v1427
      %v1492 = vsel %vm1362, %v1258, %v1428
      %v1493 = vsel %vm1363, %v1261, %v1429
      %v1494 = vsel %vm1364, %v1266, %v1430
      %v1495 = vsel %vm1365, %v1269, %v1431
      %v1496 = vsel %vm1366, %v1274, %v1432
      %v1497 = vsel %vm1367, %v1277, %v1433
      %v1498 = vsel %vm1368, %v1282, %v1434
      %v1499 = vsel %vm1369, %v1285, %v1435
      %v1500 = vsel %vm1370, %v1290, %v1436
      %v1501 = vsel %vm1371, %v1293, %v1437
      %v1502 = vsel %vm1372, %v1298, %v1438
      %v1503 = vsel %vm1373, %v1301, %v1439
      %v1504 = vsel %vm1374, %v1306, %v1440
      %v1505 = vsel %vm1375, %v1309, %v1441
      %v1506 = vpack.c.bf16 %v1443, %v1442
      %v1507 = vpack.c.bf16 %v1445, %v1444
      %v1508 = vpack.c.bf16 %v1447, %v1446
      %v1509 = vpack.c.bf16 %v1449, %v1448
      %v1510 = vpack.c.bf16 %v1451, %v1450
      %v1511 = vpack.c.bf16 %v1453, %v1452
      %v1512 = vpack.c.bf16 %v1455, %v1454
      %v1513 = vpack.c.bf16 %v1457, %v1456
      %v1514 = vpack.c.bf16 %v1459, %v1458
      %v1515 = vpack.c.bf16 %v1461, %v1460
      %v1516 = vpack.c.bf16 %v1463, %v1462
      %v1517 = vpack.c.bf16 %v1465, %v1464
      %v1518 = vpack.c.bf16 %v1467, %v1466
      %v1519 = vpack.c.bf16 %v1469, %v1468
      %v1520 = vpack.c.bf16 %v1471, %v1470
      %v1521 = vpack.c.bf16 %v1473, %v1472
      %v1522 = vpack.c.bf16 %v1475, %v1474
      %v1523 = vpack.c.bf16 %v1477, %v1476
      %v1524 = vpack.c.bf16 %v1479, %v1478
      %v1525 = vpack.c.bf16 %v1481, %v1480
      %v1526 = vpack.c.bf16 %v1483, %v1482
      %v1527 = vpack.c.bf16 %v1485, %v1484
      %v1528 = vpack.c.bf16 %v1487, %v1486
      %v1529 = vpack.c.bf16 %v1489, %v1488
      %v1530 = vpack.c.bf16 %v1491, %v1490
      %v1531 = vpack.c.bf16 %v1493, %v1492
      %v1532 = vpack.c.bf16 %v1495, %v1494
      %v1533 = vpack.c.bf16 %v1497, %v1496
      %v1534 = vpack.c.bf16 %v1499, %v1498
      %v1535 = vpack.c.bf16 %v1501, %v1500
      %v1536 = vpack.c.bf16 %v1503, %v1502
      %v1537 = vpack.c.bf16 %v1505, %v1504
      %v1538 = vld [vmem:[%s4] sm:$0xf]
      %v1539 = vld [vmem:[%s4 + $0x4] sm:$0xf]
      %v1540 = vld [vmem:[%s4 + $0x8] sm:$0xf]
      %v1541 = vld [vmem:[%s4 + $0xc] sm:$0xf]
      %v1542 = vld [vmem:[%s4 + $0x10] sm:$0xf]
      %v1543 = vld [vmem:[%s4 + $0x14] sm:$0xf]
      %v1544 = vld [vmem:[%s4 + $0x18] sm:$0xf]
      %v1545 = vld [vmem:[%s4 + $0x1c] sm:$0xf]
      %v1546 = vld [vmem:[%s4 + $0x20] sm:$0xf]
      %v1547 = vld [vmem:[%s4 + $0x24] sm:$0xf]
      %v1548 = vld [vmem:[%s4 + $0x28] sm:$0xf]
      %v1549 = vld [vmem:[%s4 + $0x2c] sm:$0xf]
      %v1550 = vld [vmem:[%s4 + $0x30] sm:$0xf]
      %v1551 = vld [vmem:[%s4 + $0x34] sm:$0xf]
      %v1552 = vld [vmem:[%s4 + $0x38] sm:$0xf]
      %v1553 = vld [vmem:[%s4 + $0x3c] sm:$0xf]
      %v1554 = vld [vmem:[%s5 + $0x2] sm:$0x1]
      %v1555 = vlaneseq
      %v1556 = vshrl.u32 %v1555, 7
      %v1557 = vsub.s32 0, %v1556
      %v1558 = vrot.slane %v1554, %v1557
      %v1575 = vunpack.c.l.b16 %v1538
      %v1576 = vunpack.c.l.b16 %v1539
      %v1577 = vunpack.c.l.b16 %v1540
      %v1578 = vunpack.c.l.b16 %v1541
      %v1579 = vunpack.c.l.b16 %v1542
      %v1580 = vunpack.c.l.b16 %v1543
      %v1581 = vunpack.c.l.b16 %v1544
      %v1582 = vunpack.c.l.b16 %v1545
      %v1583 = vunpack.c.l.b16 %v1546
      %v1584 = vunpack.c.l.b16 %v1547
      %v1585 = vunpack.c.l.b16 %v1548
      %v1586 = vunpack.c.l.b16 %v1549
      %v1587 = vunpack.c.l.b16 %v1550
      %v1588 = vunpack.c.l.b16 %v1551
      %v1589 = vunpack.c.l.b16 %v1552
      %v1590 = vunpack.c.l.b16 %v1553
      %v1591 = vpack.c.b16 %v1576, %v1575
      %v1592 = vpack.c.b16 %v1578, %v1577
      %v1593 = vpack.c.b16 %v1580, %v1579
      %v1594 = vpack.c.b16 %v1582, %v1581
      %v1595 = vpack.c.b16 %v1584, %v1583
      %v1596 = vpack.c.b16 %v1586, %v1585
      %v1597 = vpack.c.b16 %v1588, %v1587
      %v1598 = vpack.c.b16 %v1590, %v1589
      %1607 = vmatprep.subr.bf16.mxu0 0
      %1608 = vmatpush1.bf16.msra.mxu0 %v1598
      %1609 = vmatprep.subr.bf16.mxu0 0
      %1610 = vmatpush1.bf16.msra.mxu0 %v1597
      %1611 = vmatprep.subr.bf16.mxu0 0
      %1612 = vmatpush1.bf16.msra.mxu0 %v1596
      %1613 = vmatprep.subr.bf16.mxu0 0
      %1614 = vmatpush1.bf16.msra.mxu0 %v1595
      %1615 = vmatprep.subr.bf16.mxu0 0
      %1616 = vmatpush1.bf16.msra.mxu0 %v1594
      %1617 = vmatprep.subr.bf16.mxu0 0
      %1618 = vmatpush1.bf16.msra.mxu0 %v1593
      %1619 = vmatprep.subr.bf16.mxu0 0
      %1620 = vmatpush1.bf16.msra.mxu0 %v1592
      %1621 = vmatprep.subr.bf16.mxu0 0
      %1622 = vmatpush1.bf16.msra.mxu0 %v1591
      %1623 = vmatprep.subr.bf16.mxu0 0
      %1624 = vmatpush2.bf16.msra.mxu0 0
      %1625 = vmatprep.subr.bf16.mxu0 0
      %1626 = vmatpush2.bf16.msra.mxu0 0
      %1627 = vmatprep.subr.bf16.mxu0 0
      %1628 = vmatpush2.bf16.msra.mxu0 0
      %1629 = vmatprep.subr.bf16.mxu0 0
      %1630 = vmatpush2.bf16.msra.mxu0 0
      %1631 = vmatprep.subr.bf16.mxu0 0
      %1632 = vmatpush2.bf16.msra.mxu0 0
      %1633 = vmatprep.subr.bf16.mxu0 0
      %1634 = vmatpush2.bf16.msra.mxu0 0
      %1635 = vmatprep.subr.bf16.mxu0 0
      %1636 = vmatpush2.bf16.msra.mxu0 0
      %1637 = vmatprep.subr.bf16.mxu0 0
      %1638 = vmatpush2.bf16.msra.mxu0 0
      %1639 = vmatprep.mubr.bf16.mxu0 0
      %1640 = vmatmul.mubr.bf16.gmra.mxu0 %v1506
      %v1641 = vpop.f32.mrf.mxu0
      %v1642 = vadd.f32 %v1558, %v1641
      %v1643 = vpop.f32.mrf.mxu0
      %v1644 = vpop.f32.mrf.mxu0
      %v1645 = vadd.f32 %v1558, %v1644
      %v1646 = vpop.f32.mrf.mxu0
      %1647 = vmatprep.mubr.bf16.mxu0 0
      %1648 = vmatmul.mubr.bf16.gmra.mxu0 %v1507
      %v1649 = vpop.f32.mrf.mxu0
      %v1650 = vadd.f32 %v1558, %v1649
      %v1651 = vpop.f32.mrf.mxu0
      %v1652 = vpop.f32.mrf.mxu0
      %v1653 = vadd.f32 %v1558, %v1652
      %v1654 = vpop.f32.mrf.mxu0
      %1655 = vmatprep.mubr.bf16.mxu0 0
      %1656 = vmatmul.mubr.bf16.gmra.mxu0 %v1508
      %v1657 = vpop.f32.mrf.mxu0
      %v1658 = vadd.f32 %v1558, %v1657
      %v1659 = vpop.f32.mrf.mxu0
      %v1660 = vpop.f32.mrf.mxu0
      %v1661 = vadd.f32 %v1558, %v1660
      %v1662 = vpop.f32.mrf.mxu0
      %1663 = vmatprep.mubr.bf16.mxu0 0
      %1664 = vmatmul.mubr.bf16.gmra.mxu0 %v1509
      %v1665 = vpop.f32.mrf.mxu0
      %v1666 = vadd.f32 %v1558, %v1665
      %v1667 = vpop.f32.mrf.mxu0
      %v1668 = vpop.f32.mrf.mxu0
      %v1669 = vadd.f32 %v1558, %v1668
      %v1670 = vpop.f32.mrf.mxu0
      %1671 = vmatprep.mubr.bf16.mxu0 0
      %1672 = vmatmul.mubr.bf16.gmra.mxu0 %v1510
      %v1673 = vpop.f32.mrf.mxu0
      %v1674 = vadd.f32 %v1558, %v1673
      %v1675 = vpop.f32.mrf.mxu0
      %v1676 = vpop.f32.mrf.mxu0
      %v1677 = vadd.f32 %v1558, %v1676
      %v1678 = vpop.f32.mrf.mxu0
      %1679 = vmatprep.mubr.bf16.mxu0 0
      %1680 = vmatmul.mubr.bf16.gmra.mxu0 %v1511
      %v1681 = vpop.f32.mrf.mxu0
      %v1682 = vadd.f32 %v1558, %v1681
      %v1683 = vpop.f32.mrf.mxu0
      %v1684 = vpop.f32.mrf.mxu0
      %v1685 = vadd.f32 %v1558, %v1684
      %v1686 = vpop.f32.mrf.mxu0
      %1687 = vmatprep.mubr.bf16.mxu0 0
      %1688 = vmatmul.mubr.bf16.gmra.mxu0 %v1512
      %v1689 = vpop.f32.mrf.mxu0
      %v1690 = vadd.f32 %v1558, %v1689
      %v1691 = vpop.f32.mrf.mxu0
      %v1692 = vpop.f32.mrf.mxu0
      %v1693 = vadd.f32 %v1558, %v1692
      %v1694 = vpop.f32.mrf.mxu0
      %1695 = vmatprep.mubr.bf16.mxu0 0
      %1696 = vmatmul.mubr.bf16.gmra.mxu0 %v1513
      %v1697 = vpop.f32.mrf.mxu0
      %v1698 = vadd.f32 %v1558, %v1697
      %v1699 = vpop.f32.mrf.mxu0
      %v1700 = vpop.f32.mrf.mxu0
      %v1701 = vadd.f32 %v1558, %v1700
      %v1702 = vpop.f32.mrf.mxu0
      %1703 = vmatprep.mubr.bf16.mxu0 0
      %1704 = vmatmul.mubr.bf16.gmra.mxu0 %v1514
      %v1705 = vpop.f32.mrf.mxu0
      %v1706 = vadd.f32 %v1558, %v1705
      %v1707 = vpop.f32.mrf.mxu0
      %v1708 = vpop.f32.mrf.mxu0
      %v1709 = vadd.f32 %v1558, %v1708
      %v1710 = vpop.f32.mrf.mxu0
      %1711 = vmatprep.mubr.bf16.mxu0 0
      %1712 = vmatmul.mubr.bf16.gmra.mxu0 %v1515
      %v1713 = vpop.f32.mrf.mxu0
      %v1714 = vadd.f32 %v1558, %v1713
      %v1715 = vpop.f32.mrf.mxu0
      %v1716 = vpop.f32.mrf.mxu0
      %v1717 = vadd.f32 %v1558, %v1716
      %v1718 = vpop.f32.mrf.mxu0
      %1719 = vmatprep.mubr.bf16.mxu0 0
      %1720 = vmatmul.mubr.bf16.gmra.mxu0 %v1516
      %v1721 = vpop.f32.mrf.mxu0
      %v1722 = vadd.f32 %v1558, %v1721
      %v1723 = vpop.f32.mrf.mxu0
      %v1724 = vpop.f32.mrf.mxu0
      %v1725 = vadd.f32 %v1558, %v1724
      %v1726 = vpop.f32.mrf.mxu0
      %1727 = vmatprep.mubr.bf16.mxu0 0
      %1728 = vmatmul.mubr.bf16.gmra.mxu0 %v1517
      %v1729 = vpop.f32.mrf.mxu0
      %v1730 = vadd.f32 %v1558, %v1729
      %v1731 = vpop.f32.mrf.mxu0
      %v1732 = vpop.f32.mrf.mxu0
      %v1733 = vadd.f32 %v1558, %v1732
      %v1734 = vpop.f32.mrf.mxu0
      %1735 = vmatprep.mubr.bf16.mxu0 0
      %1736 = vmatmul.mubr.bf16.gmra.mxu0 %v1518
      %v1737 = vpop.f32.mrf.mxu0
      %v1738 = vadd.f32 %v1558, %v1737
      %v1739 = vpop.f32.mrf.mxu0
      %v1740 = vpop.f32.mrf.mxu0
      %v1741 = vadd.f32 %v1558, %v1740
      %v1742 = vpop.f32.mrf.mxu0
      %1743 = vmatprep.mubr.bf16.mxu0 0
      %1744 = vmatmul.mubr.bf16.gmra.mxu0 %v1519
      %v1745 = vpop.f32.mrf.mxu0
      %v1746 = vadd.f32 %v1558, %v1745
      %v1747 = vpop.f32.mrf.mxu0
      %v1748 = vpop.f32.mrf.mxu0
      %v1749 = vadd.f32 %v1558, %v1748
      %v1750 = vpop.f32.mrf.mxu0
      %1751 = vmatprep.mubr.bf16.mxu0 0
      %1752 = vmatmul.mubr.bf16.gmra.mxu0 %v1520
      %v1753 = vpop.f32.mrf.mxu0
      %v1754 = vadd.f32 %v1558, %v1753
      %v1755 = vpop.f32.mrf.mxu0
      %v1756 = vpop.f32.mrf.mxu0
      %v1757 = vadd.f32 %v1558, %v1756
      %v1758 = vpop.f32.mrf.mxu0
      %1759 = vmatprep.mubr.bf16.mxu0 0
      %1760 = vmatmul.mubr.bf16.gmra.mxu0 %v1521
      %v1761 = vpop.f32.mrf.mxu0
      %v1762 = vadd.f32 %v1558, %v1761
      %v1763 = vpop.f32.mrf.mxu0
      %v1764 = vpop.f32.mrf.mxu0
      %v1765 = vadd.f32 %v1558, %v1764
      %v1766 = vpop.f32.mrf.mxu0
      %1767 = vmatprep.mubr.bf16.mxu0 0
      %1768 = vmatmul.mubr.bf16.gmra.mxu0 %v1522
      %v1769 = vpop.f32.mrf.mxu0
      %v1770 = vadd.f32 %v1558, %v1769
      %v1771 = vpop.f32.mrf.mxu0
      %v1772 = vpop.f32.mrf.mxu0
      %v1773 = vadd.f32 %v1558, %v1772
      %v1774 = vpop.f32.mrf.mxu0
      %1775 = vmatprep.mubr.bf16.mxu0 0
      %1776 = vmatmul.mubr.bf16.gmra.mxu0 %v1523
      %v1777 = vpop.f32.mrf.mxu0
      %v1778 = vadd.f32 %v1558, %v1777
      %v1779 = vpop.f32.mrf.mxu0
      %v1780 = vpop.f32.mrf.mxu0
      %v1781 = vadd.f32 %v1558, %v1780
      %v1782 = vpop.f32.mrf.mxu0
      %1783 = vmatprep.mubr.bf16.mxu0 0
      %1784 = vmatmul.mubr.bf16.gmra.mxu0 %v1524
      %v1785 = vpop.f32.mrf.mxu0
      %v1786 = vadd.f32 %v1558, %v1785
      %v1787 = vpop.f32.mrf.mxu0
      %v1788 = vpop.f32.mrf.mxu0
      %v1789 = vadd.f32 %v1558, %v1788
      %v1790 = vpop.f32.mrf.mxu0
      %1791 = vmatprep.mubr.bf16.mxu0 0
      %1792 = vmatmul.mubr.bf16.gmra.mxu0 %v1525
      %v1793 = vpop.f32.mrf.mxu0
      %v1794 = vadd.f32 %v1558, %v1793
      %v1795 = vpop.f32.mrf.mxu0
      %v1796 = vpop.f32.mrf.mxu0
      %v1797 = vadd.f32 %v1558, %v1796
      %v1798 = vpop.f32.mrf.mxu0
      %1799 = vmatprep.mubr.bf16.mxu0 0
      %1800 = vmatmul.mubr.bf16.gmra.mxu0 %v1526
      %v1801 = vpop.f32.mrf.mxu0
      %v1802 = vadd.f32 %v1558, %v1801
      %v1803 = vpop.f32.mrf.mxu0
      %v1804 = vpop.f32.mrf.mxu0
      %v1805 = vadd.f32 %v1558, %v1804
      %v1806 = vpop.f32.mrf.mxu0
      %1807 = vmatprep.mubr.bf16.mxu0 0
      %1808 = vmatmul.mubr.bf16.gmra.mxu0 %v1527
      %v1809 = vpop.f32.mrf.mxu0
      %v1810 = vadd.f32 %v1558, %v1809
      %v1811 = vpop.f32.mrf.mxu0
      %v1812 = vpop.f32.mrf.mxu0
      %v1813 = vadd.f32 %v1558, %v1812
      %v1814 = vpop.f32.mrf.mxu0
      %1815 = vmatprep.mubr.bf16.mxu0 0
      %1816 = vmatmul.mubr.bf16.gmra.mxu0 %v1528
      %v1817 = vpop.f32.mrf.mxu0
      %v1818 = vadd.f32 %v1558, %v1817
      %v1819 = vpop.f32.mrf.mxu0
      %v1820 = vpop.f32.mrf.mxu0
      %v1821 = vadd.f32 %v1558, %v1820
      %v1822 = vpop.f32.mrf.mxu0
      %1823 = vmatprep.mubr.bf16.mxu0 0
      %1824 = vmatmul.mubr.bf16.gmra.mxu0 %v1529
      %v1825 = vpop.f32.mrf.mxu0
      %v1826 = vadd.f32 %v1558, %v1825
      %v1827 = vpop.f32.mrf.mxu0
      %v1828 = vpop.f32.mrf.mxu0
      %v1829 = vadd.f32 %v1558, %v1828
      %v1830 = vpop.f32.mrf.mxu0
      %1831 = vmatprep.mubr.bf16.mxu0 0
      %1832 = vmatmul.mubr.bf16.gmra.mxu0 %v1530
      %v1833 = vpop.f32.mrf.mxu0
      %v1834 = vadd.f32 %v1558, %v1833
      %v1835 = vpop.f32.mrf.mxu0
      %v1836 = vpop.f32.mrf.mxu0
      %v1837 = vadd.f32 %v1558, %v1836
      %v1838 = vpop.f32.mrf.mxu0
      %1839 = vmatprep.mubr.bf16.mxu0 0
      %1840 = vmatmul.mubr.bf16.gmra.mxu0 %v1531
      %v1841 = vpop.f32.mrf.mxu0
      %v1842 = vadd.f32 %v1558, %v1841
      %v1843 = vpop.f32.mrf.mxu0
      %v1844 = vpop.f32.mrf.mxu0
      %v1845 = vadd.f32 %v1558, %v1844
      %v1846 = vpop.f32.mrf.mxu0
      %1847 = vmatprep.mubr.bf16.mxu0 0
      %1848 = vmatmul.mubr.bf16.gmra.mxu0 %v1532
      %v1849 = vpop.f32.mrf.mxu0
      %v1850 = vadd.f32 %v1558, %v1849
      %v1851 = vpop.f32.mrf.mxu0
      %v1852 = vpop.f32.mrf.mxu0
      %v1853 = vadd.f32 %v1558, %v1852
      %v1854 = vpop.f32.mrf.mxu0
      %1855 = vmatprep.mubr.bf16.mxu0 0
      %1856 = vmatmul.mubr.bf16.gmra.mxu0 %v1533
      %v1857 = vpop.f32.mrf.mxu0
      %v1858 = vadd.f32 %v1558, %v1857
      %v1859 = vpop.f32.mrf.mxu0
      %v1860 = vpop.f32.mrf.mxu0
      %v1861 = vadd.f32 %v1558, %v1860
      %v1862 = vpop.f32.mrf.mxu0
      %1863 = vmatprep.mubr.bf16.mxu0 0
      %1864 = vmatmul.mubr.bf16.gmra.mxu0 %v1534
      %v1865 = vpop.f32.mrf.mxu0
      %v1866 = vadd.f32 %v1558, %v1865
      %v1867 = vpop.f32.mrf.mxu0
      %v1868 = vpop.f32.mrf.mxu0
      %v1869 = vadd.f32 %v1558, %v1868
      %v1870 = vpop.f32.mrf.mxu0
      %1871 = vmatprep.mubr.bf16.mxu0 0
      %1872 = vmatmul.mubr.bf16.gmra.mxu0 %v1535
      %v1873 = vpop.f32.mrf.mxu0
      %v1874 = vadd.f32 %v1558, %v1873
      %v1875 = vpop.f32.mrf.mxu0
      %v1876 = vpop.f32.mrf.mxu0
      %v1877 = vadd.f32 %v1558, %v1876
      %v1878 = vpop.f32.mrf.mxu0
      %1879 = vmatprep.mubr.bf16.mxu0 0
      %1880 = vmatmul.mubr.bf16.gmra.mxu0 %v1536
      %v1881 = vpop.f32.mrf.mxu0
      %v1882 = vadd.f32 %v1558, %v1881
      %v1883 = vpop.f32.mrf.mxu0
      %v1884 = vpop.f32.mrf.mxu0
      %v1885 = vadd.f32 %v1558, %v1884
      %v1886 = vpop.f32.mrf.mxu0
      %1887 = vmatprep.mubr.bf16.mxu0 0
      %1888 = vmatmul.mubr.bf16.gmra.mxu0 %v1537
      %v1889 = vpop.f32.mrf.mxu0
      %v1890 = vadd.f32 %v1558, %v1889
      %v1891 = vpop.f32.mrf.mxu0
      %v1892 = vpop.f32.mrf.mxu0
      %v1893 = vadd.f32 %v1558, %v1892
      %v1894 = vpop.f32.mrf.mxu0
      %1895 = vdwg.mxu0
      %vm1896 = vcmask 15360
      %1897 = vst.msk [vmem:[%s233] sm:$0xff] %vm1896, %v1642
      %1898 = vst.msk [vmem:[%s233 + $0x8] sm:$0xff] %vm1896, %v1645
      %1899 = vst.msk [vmem:[%s233 + $0x10] sm:$0xff] %vm1896, %v1650
      %1900 = vst.msk [vmem:[%s233 + $0x18] sm:$0xff] %vm1896, %v1653
      %1901 = vst.msk [vmem:[%s233 + $0x20] sm:$0xff] %vm1896, %v1658
      %1902 = vst.msk [vmem:[%s233 + $0x28] sm:$0xff] %vm1896, %v1661
      %1903 = vst.msk [vmem:[%s233 + $0x30] sm:$0xff] %vm1896, %v1666
      %1904 = vst.msk [vmem:[%s233 + $0x38] sm:$0xff] %vm1896, %v1669
      %1905 = vst.msk [vmem:[%s233 + $0x40] sm:$0xff] %vm1896, %v1674
      %1906 = vst.msk [vmem:[%s233 + $0x48] sm:$0xff] %vm1896, %v1677
      %1907 = vst.msk [vmem:[%s233 + $0x50] sm:$0xff] %vm1896, %v1682
      %1908 = vst.msk [vmem:[%s233 + $0x58] sm:$0xff] %vm1896, %v1685
      %1909 = vst.msk [vmem:[%s233 + $0x60] sm:$0xff] %vm1896, %v1690
      %1910 = vst.msk [vmem:[%s233 + $0x68] sm:$0xff] %vm1896, %v1693
      %1911 = vst.msk [vmem:[%s233 + $0x70] sm:$0xff] %vm1896, %v1698
      %1912 = vst.msk [vmem:[%s233 + $0x78] sm:$0xff] %vm1896, %v1701
      %1913 = vst.msk [vmem:[%s233 + $0x80] sm:$0xff] %vm1896, %v1706
      %1914 = vst.msk [vmem:[%s233 + $0x88] sm:$0xff] %vm1896, %v1709
      %1915 = vst.msk [vmem:[%s233 + $0x90] sm:$0xff] %vm1896, %v1714
      %1916 = vst.msk [vmem:[%s233 + $0x98] sm:$0xff] %vm1896, %v1717
      %1917 = vst.msk [vmem:[%s233 + $0xa0] sm:$0xff] %vm1896, %v1722
      %1918 = vst.msk [vmem:[%s233 + $0xa8] sm:$0xff] %vm1896, %v1725
      %1919 = vst.msk [vmem:[%s233 + $0xb0] sm:$0xff] %vm1896, %v1730
      %1920 = vst.msk [vmem:[%s233 + $0xb8] sm:$0xff] %vm1896, %v1733
      %1921 = vst.msk [vmem:[%s233 + $0xc0] sm:$0xff] %vm1896, %v1738
      %1922 = vst.msk [vmem:[%s233 + $0xc8] sm:$0xff] %vm1896, %v1741
      %1923 = vst.msk [vmem:[%s233 + $0xd0] sm:$0xff] %vm1896, %v1746
      %1924 = vst.msk [vmem:[%s233 + $0xd8] sm:$0xff] %vm1896, %v1749
      %1925 = vst.msk [vmem:[%s233 + $0xe0] sm:$0xff] %vm1896, %v1754
      %1926 = vst.msk [vmem:[%s233 + $0xe8] sm:$0xff] %vm1896, %v1757
      %1927 = vst.msk [vmem:[%s233 + $0xf0] sm:$0xff] %vm1896, %v1762
      %1928 = vst.msk [vmem:[%s233 + $0xf8] sm:$0xff] %vm1896, %v1765
      %1929 = vst.msk [vmem:[%s233 + $0x100] sm:$0xff] %vm1896, %v1770
      %1930 = vst.msk [vmem:[%s233 + $0x108] sm:$0xff] %vm1896, %v1773
      %1931 = vst.msk [vmem:[%s233 + $0x110] sm:$0xff] %vm1896, %v1778
      %1932 = vst.msk [vmem:[%s233 + $0x118] sm:$0xff] %vm1896, %v1781
      %1933 = vst.msk [vmem:[%s233 + $0x120] sm:$0xff] %vm1896, %v1786
      %1934 = vst.msk [vmem:[%s233 + $0x128] sm:$0xff] %vm1896, %v1789
      %1935 = vst.msk [vmem:[%s233 + $0x130] sm:$0xff] %vm1896, %v1794
      %1936 = vst.msk [vmem:[%s233 + $0x138] sm:$0xff] %vm1896, %v1797
      %1937 = vst.msk [vmem:[%s233 + $0x140] sm:$0xff] %vm1896, %v1802
      %1938 = vst.msk [vmem:[%s233 + $0x148] sm:$0xff] %vm1896, %v1805
      %1939 = vst.msk [vmem:[%s233 + $0x150] sm:$0xff] %vm1896, %v1810
      %1940 = vst.msk [vmem:[%s233 + $0x158] sm:$0xff] %vm1896, %v1813
      %1941 = vst.msk [vmem:[%s233 + $0x160] sm:$0xff] %vm1896, %v1818
      %1942 = vst.msk [vmem:[%s233 + $0x168] sm:$0xff] %vm1896, %v1821
      %1943 = vst.msk [vmem:[%s233 + $0x170] sm:$0xff] %vm1896, %v1826
      %1944 = vst.msk [vmem:[%s233 + $0x178] sm:$0xff] %vm1896, %v1829
      %1945 = vst.msk [vmem:[%s233 + $0x180] sm:$0xff] %vm1896, %v1834
      %1946 = vst.msk [vmem:[%s233 + $0x188] sm:$0xff] %vm1896, %v1837
      %1947 = vst.msk [vmem:[%s233 + $0x190] sm:$0xff] %vm1896, %v1842
      %1948 = vst.msk [vmem:[%s233 + $0x198] sm:$0xff] %vm1896, %v1845
      %1949 = vst.msk [vmem:[%s233 + $0x1a0] sm:$0xff] %vm1896, %v1850
      %1950 = vst.msk [vmem:[%s233 + $0x1a8] sm:$0xff] %vm1896, %v1853
      %1951 = vst.msk [vmem:[%s233 + $0x1b0] sm:$0xff] %vm1896, %v1858
      %1952 = vst.msk [vmem:[%s233 + $0x1b8] sm:$0xff] %vm1896, %v1861
      %1953 = vst.msk [vmem:[%s233 + $0x1c0] sm:$0xff] %vm1896, %v1866
      %1954 = vst.msk [vmem:[%s233 + $0x1c8] sm:$0xff] %vm1896, %v1869
      %1955 = vst.msk [vmem:[%s233 + $0x1d0] sm:$0xff] %vm1896, %v1874
      %1956 = vst.msk [vmem:[%s233 + $0x1d8] sm:$0xff] %vm1896, %v1877
      %1957 = vst.msk [vmem:[%s233 + $0x1e0] sm:$0xff] %vm1896, %v1882
      %1958 = vst.msk [vmem:[%s233 + $0x1e8] sm:$0xff] %vm1896, %v1885
      %1959 = vst.msk [vmem:[%s233 + $0x1f0] sm:$0xff] %vm1896, %v1890
      %1960 = vst.msk [vmem:[%s233 + $0x1f8] sm:$0xff] %vm1896, %v1893
      %s1961 = smul.u32 64, %s23
      %p1962 = scmp.lt.s32.totalorder %s1961, 127
      %s1963 = scalar_select %p1962, %s1961, 127
      %s1964 = smul.addr %s1963, 8
      %s1965 = scalar_lea.vmem %s6, %s1964
      // Predicated region
      $region41: #{fcn5_forward.1} parent=39 // pred_check
        %p1966 = pneg %p151
      $region42: #{fcn5_forward.1} parent=39 // pred_check_branch
        %1968 = sbr.rel (%p1966) target = $region44
      $region43: #{fcn5_forward.1} parent=39 // pred_region
        %s1969 = smul.u32 64, %s23
      $region44: #{fcn5_forward.1} parent=39 // pred_fallthru
        _
    $region40: #{fcn5_forward.1} parent=5 // pred_fallthru
      _
    %p1970 = scmp.le.s32.totalorder 2, %s18
    // Predicated region
    $region45: #{fcn5_forward.1} parent=5 // pred_check
      %p1971 = pneg %p1970
    $region46: #{fcn5_forward.1} parent=5 // pred_check_branch
      %1973 = sbr.rel (%p1971) target = $region48
    $region47: #{fcn5_forward.1} parent=5 // pred_region
      %s1974 = ssub.s32 %s18, 2
      // Predicated region
      $region49: #{fcn5_forward.1} parent=47 // pred_check
        %p1975 = pneg %p157
      $region50: #{fcn5_forward.1} parent=47 // pred_check_branch
        %1977 = sbr.rel (%p1975) target = $region52
      $region51: #{fcn5_forward.1} parent=47 // pred_region
        %s1978 = smul.u32 64, %s24
        %p1979 = scmp.lt.s32.totalorder %s1978, 127
        %s1980 = scalar_select %p1979, %s1978, 127
        %s1981 = smul.addr %s1980, 8
        %s1982 = scalar_lea.vmem %s6, %s1981
      $region52: #{fcn5_forward.1} parent=47 // pred_fallthru
        _
    $region48: #{fcn5_forward.1} parent=5 // pred_fallthru
      _
  $region6: #{fcn5_forward.1} parent=0 // loop_footer
    %s22 = sadd.s32 1, %s18
  $region7: #{fcn5_forward.1} parent=0 // loop_footer_branch
    %17 = sbr.rel target = $region3
  $region8: #{fcn5_forward.1} parent=0 // loop_exit
    _

</llo_original>
